<compile_context>
chip_gen: v7x
topology: tpu7x:2x2x1
jax: 0.10.0
libtpu: 0.0.40
codegen_flags: <defaults>
</compile_context>

<pallas_src>
import jax
import jax.numpy as jnp
from jax.experimental import pallas as pl
from jax.experimental.pallas import tpu as pltpu

NUM_LAYERS = 20
FEATURES = 10
TILE_B = 256          # batch tile on the lane axis (multiple of 128 -> lane-dense)


def module_list_kernel(w_ref, b_ref, x_ref, o_ref):
    """20 sequential Linear(10,10) layers, fully unrolled, transposed layout.

    w_ref : (20, 10, 10) VMEM  -- PyTorch (out, in) layout, W_i
    b_ref : (20, 10, 1)  VMEM
    x_ref : (10, TILE_B) VMEM  -- features on sublanes, batch on lanes
    o_ref : (10, TILE_B) VMEM
    """
    acc = x_ref[...].astype(jnp.float32)
    # NOTE: the chain is activation-free so it could be pre-composed into one
    # affine map in the wrapper; we keep the per-layer structure to mirror the
    # PyTorch module, but unrolled so every weight/bias slice is static.
    for i in range(NUM_LAYERS):
        acc = jnp.dot(w_ref[i], acc, preferred_element_type=jnp.float32) + b_ref[i]
    o_ref[...] = acc.astype(o_ref.dtype)


def module_list_forward(x, weights, biases, *, tile_b=TILE_B):
    """x: (B, 10); weights: (20, 10, 10) in PyTorch (out, in) layout;
    biases: (20, 10). Returns (B, 10) float32."""
    B = x.shape[0]
    num_tiles = pl.cdiv(B, tile_b)
    b_pad = num_tiles * tile_b

    # Plain-JAX glue: batch -> lane axis, pad batch up to the tile size.
    x_t = jnp.pad(x.T.astype(jnp.float32), ((0, 0), (0, b_pad - B)))     # (10, b_pad)
    b3 = biases.reshape(NUM_LAYERS, FEATURES, 1).astype(jnp.float32)     # (20, 10, 1)

    out_t = pl.pallas_call(
        module_list_kernel,
        out_shape=jax.ShapeDtypeStruct((FEATURES, b_pad), jnp.float32),
        grid=(num_tiles,),
        in_specs=[
            # weights + biases are ~KBs: keep fully resident, same block every step
            pl.BlockSpec((NUM_LAYERS, FEATURES, FEATURES), lambda i: (0, 0, 0)),
            pl.BlockSpec((NUM_LAYERS, FEATURES, 1), lambda i: (0, 0, 0)),
            # activations tiled along the (lane) batch axis -> auto double-buffering
            pl.BlockSpec((FEATURES, tile_b), lambda i: (0, i)),
        ],
        out_specs=pl.BlockSpec((FEATURES, tile_b), lambda i: (0, i)),
        compiler_params=pltpu.CompilerParams(
            dimension_semantics=("parallel",)),   # shard batch tiles across TCs (v7x)
    )(weights.astype(jnp.float32), b3, x_t)

    return out_t[:, :B].T


def init_params(key):
    """Deterministic init mimicking PyTorch nn.Linear defaults:
    U(-1/sqrt(fan_in), +1/sqrt(fan_in)) for both weight and bias."""
    kw, kb = jax.random.split(key)
    bound = 1.0 / jnp.sqrt(jnp.float32(FEATURES))
    weights = jax.random.uniform(
        kw, (NUM_LAYERS, FEATURES, FEATURES), jnp.float32, -bound, bound)
    biases = jax.random.uniform(
        kb, (NUM_LAYERS, FEATURES), jnp.float32, -bound, bound)
    return weights, biases


def reference_forward(x, weights, biases):
    """Pure-JAX reference replicating the PyTorch forward loop."""
    for i in range(NUM_LAYERS):
        x = x @ weights[i].T + biases[i]
    return x


if __name__ == "__main__":
    key = jax.random.PRNGKey(0)
    kx, kp = jax.random.split(key)

    B = 2
    x = jax.random.normal(kx, (B, FEATURES), jnp.float32)
    weights, biases = init_params(kp)

    out = module_list_forward(x, weights, biases)
    out = jax.block_until_ready(out)

    ref = reference_forward(x, weights, biases)
    assert out.shape == (B, FEATURES)
    assert jnp.allclose(out, ref, atol=1e-4, rtol=1e-4), (
        f"mismatch: max abs diff {jnp.max(jnp.abs(out - ref))}")

    print("KERNEL_OK")
</pallas_src>

<mosaic_0001>
module attributes {stable_mosaic.version = 11 : i64} {
  func.func @module_list_kernel(%arg0: i32, %arg1: memref<20x10x10xf32, #tpu.memory_space<vmem>>, %arg2: memref<20x10x1xf32, #tpu.memory_space<vmem>>, %arg3: memref<10x256xf32, #tpu.memory_space<vmem>>, %arg4: memref<10x256xf32, #tpu.memory_space<vmem>>) attributes {dimension_semantics = [#tpu.dimension_semantics<parallel>], iteration_bounds = array<i64: 1>, scalar_prefetch = 0 : i64, scratch_operands = 0 : i64, tpu.core_type = #tpu.core_type<tc>, window_params = [{pipeline_mode = #tpu.pipeline_mode<synchronous>, transform_indices = @transform_0, window_bounds = array<i64: 20, 10, 10>}, {pipeline_mode = #tpu.pipeline_mode<synchronous>, transform_indices = @transform_1, window_bounds = array<i64: 20, 10, 1>}, {transform_indices = @transform_2, window_bounds = array<i64: 10, 256>}, {transform_indices = @transform_3, window_bounds = array<i64: 10, 256>}]} {
    %c0 = arith.constant 0 : index
    %c0_0 = arith.constant 0 : index
    %0 = vector.load %arg3[%c0, %c0_0] : memref<10x256xf32, #tpu.memory_space<vmem>>, vector<10x256xf32>
    %c0_1 = arith.constant 0 : index
    %c0_2 = arith.constant 0 : index
    %c0_3 = arith.constant 0 : index
    %1 = vector.load %arg1[%c0_1, %c0_2, %c0_3] : memref<20x10x10xf32, #tpu.memory_space<vmem>>, vector<1x10x10xf32>
    %2 = vector.shape_cast %1 : vector<1x10x10xf32> to vector<10x10xf32>
    %cst = arith.constant dense<0.000000e+00> : vector<10x256xf32>
    %3 = tpu.matmul %2, %0, %cst {dimension_numbers = #tpu.dot_dimension_numbers<[1], [0], [0], [1], [0, 0, 1, 1], [], []>} : vector<10x10xf32>, vector<10x256xf32>, vector<10x256xf32> -> vector<10x256xf32>
    %c0_4 = arith.constant 0 : index
    %c0_5 = arith.constant 0 : index
    %c0_6 = arith.constant 0 : index
    %4 = vector.load %arg2[%c0_4, %c0_5, %c0_6] : memref<20x10x1xf32, #tpu.memory_space<vmem>>, vector<1x10x1xf32>
    %5 = vector.shape_cast %4 : vector<1x10x1xf32> to vector<10x1xf32>
    %6 = vector.broadcast %5 : vector<10x1xf32> to vector<10x256xf32>
    %7 = arith.addf %3, %6 : vector<10x256xf32>
    %c1 = arith.constant 1 : index
    %c0_7 = arith.constant 0 : index
    %c0_8 = arith.constant 0 : index
    %8 = vector.load %arg1[%c1, %c0_7, %c0_8] : memref<20x10x10xf32, #tpu.memory_space<vmem>>, vector<1x10x10xf32>
    %9 = vector.shape_cast %8 : vector<1x10x10xf32> to vector<10x10xf32>
    %cst_9 = arith.constant dense<0.000000e+00> : vector<10x256xf32>
    %10 = tpu.matmul %9, %7, %cst_9 {dimension_numbers = #tpu.dot_dimension_numbers<[1], [0], [0], [1], [0, 0, 1, 1], [], []>} : vector<10x10xf32>, vector<10x256xf32>, vector<10x256xf32> -> vector<10x256xf32>
    %c1_10 = arith.constant 1 : index
    %c0_11 = arith.constant 0 : index
    %c0_12 = arith.constant 0 : index
    %11 = vector.load %arg2[%c1_10, %c0_11, %c0_12] : memref<20x10x1xf32, #tpu.memory_space<vmem>>, vector<1x10x1xf32>
    %12 = vector.shape_cast %11 : vector<1x10x1xf32> to vector<10x1xf32>
    %13 = vector.broadcast %12 : vector<10x1xf32> to vector<10x256xf32>
    %14 = arith.addf %10, %13 : vector<10x256xf32>
    %c2 = arith.constant 2 : index
    %c0_13 = arith.constant 0 : index
    %c0_14 = arith.constant 0 : index
    %15 = vector.load %arg1[%c2, %c0_13, %c0_14] : memref<20x10x10xf32, #tpu.memory_space<vmem>>, vector<1x10x10xf32>
    %16 = vector.shape_cast %15 : vector<1x10x10xf32> to vector<10x10xf32>
    %cst_15 = arith.constant dense<0.000000e+00> : vector<10x256xf32>
    %17 = tpu.matmul %16, %14, %cst_15 {dimension_numbers = #tpu.dot_dimension_numbers<[1], [0], [0], [1], [0, 0, 1, 1], [], []>} : vector<10x10xf32>, vector<10x256xf32>, vector<10x256xf32> -> vector<10x256xf32>
    %c2_16 = arith.constant 2 : index
    %c0_17 = arith.constant 0 : index
    %c0_18 = arith.constant 0 : index
    %18 = vector.load %arg2[%c2_16, %c0_17, %c0_18] : memref<20x10x1xf32, #tpu.memory_space<vmem>>, vector<1x10x1xf32>
    %19 = vector.shape_cast %18 : vector<1x10x1xf32> to vector<10x1xf32>
    %20 = vector.broadcast %19 : vector<10x1xf32> to vector<10x256xf32>
    %21 = arith.addf %17, %20 : vector<10x256xf32>
    %c3 = arith.constant 3 : index
    %c0_19 = arith.constant 0 : index
    %c0_20 = arith.constant 0 : index
    %22 = vector.load %arg1[%c3, %c0_19, %c0_20] : memref<20x10x10xf32, #tpu.memory_space<vmem>>, vector<1x10x10xf32>
    %23 = vector.shape_cast %22 : vector<1x10x10xf32> to vector<10x10xf32>
    %cst_21 = arith.constant dense<0.000000e+00> : vector<10x256xf32>
    %24 = tpu.matmul %23, %21, %cst_21 {dimension_numbers = #tpu.dot_dimension_numbers<[1], [0], [0], [1], [0, 0, 1, 1], [], []>} : vector<10x10xf32>, vector<10x256xf32>, vector<10x256xf32> -> vector<10x256xf32>
    %c3_22 = arith.constant 3 : index
    %c0_23 = arith.constant 0 : index
    %c0_24 = arith.constant 0 : index
    %25 = vector.load %arg2[%c3_22, %c0_23, %c0_24] : memref<20x10x1xf32, #tpu.memory_space<vmem>>, vector<1x10x1xf32>
    %26 = vector.shape_cast %25 : vector<1x10x1xf32> to vector<10x1xf32>
    %27 = vector.broadcast %26 : vector<10x1xf32> to vector<10x256xf32>
    %28 = arith.addf %24, %27 : vector<10x256xf32>
    %c4 = arith.constant 4 : index
    %c0_25 = arith.constant 0 : index
    %c0_26 = arith.constant 0 : index
    %29 = vector.load %arg1[%c4, %c0_25, %c0_26] : memref<20x10x10xf32, #tpu.memory_space<vmem>>, vector<1x10x10xf32>
    %30 = vector.shape_cast %29 : vector<1x10x10xf32> to vector<10x10xf32>
    %cst_27 = arith.constant dense<0.000000e+00> : vector<10x256xf32>
    %31 = tpu.matmul %30, %28, %cst_27 {dimension_numbers = #tpu.dot_dimension_numbers<[1], [0], [0], [1], [0, 0, 1, 1], [], []>} : vector<10x10xf32>, vector<10x256xf32>, vector<10x256xf32> -> vector<10x256xf32>
    %c4_28 = arith.constant 4 : index
    %c0_29 = arith.constant 0 : index
    %c0_30 = arith.constant 0 : index
    %32 = vector.load %arg2[%c4_28, %c0_29, %c0_30] : memref<20x10x1xf32, #tpu.memory_space<vmem>>, vector<1x10x1xf32>
    %33 = vector.shape_cast %32 : vector<1x10x1xf32> to vector<10x1xf32>
    %34 = vector.broadcast %33 : vector<10x1xf32> to vector<10x256xf32>
    %35 = arith.addf %31, %34 : vector<10x256xf32>
    %c5 = arith.constant 5 : index
    %c0_31 = arith.constant 0 : index
    %c0_32 = arith.constant 0 : index
    %36 = vector.load %arg1[%c5, %c0_31, %c0_32] : memref<20x10x10xf32, #tpu.memory_space<vmem>>, vector<1x10x10xf32>
    %37 = vector.shape_cast %36 : vector<1x10x10xf32> to vector<10x10xf32>
    %cst_33 = arith.constant dense<0.000000e+00> : vector<10x256xf32>
    %38 = tpu.matmul %37, %35, %cst_33 {dimension_numbers = #tpu.dot_dimension_numbers<[1], [0], [0], [1], [0, 0, 1, 1], [], []>} : vector<10x10xf32>, vector<10x256xf32>, vector<10x256xf32> -> vector<10x256xf32>
    %c5_34 = arith.constant 5 : index
    %c0_35 = arith.constant 0 : index
    %c0_36 = arith.constant 0 : index
    %39 = vector.load %arg2[%c5_34, %c0_35, %c0_36] : memref<20x10x1xf32, #tpu.memory_space<vmem>>, vector<1x10x1xf32>
    %40 = vector.shape_cast %39 : vector<1x10x1xf32> to vector<10x1xf32>
    %41 = vector.broadcast %40 : vector<10x1xf32> to vector<10x256xf32>
    %42 = arith.addf %38, %41 : vector<10x256xf32>
    %c6 = arith.constant 6 : index
    %c0_37 = arith.constant 0 : index
    %c0_38 = arith.constant 0 : index
    %43 = vector.load %arg1[%c6, %c0_37, %c0_38] : memref<20x10x10xf32, #tpu.memory_space<vmem>>, vector<1x10x10xf32>
    %44 = vector.shape_cast %43 : vector<1x10x10xf32> to vector<10x10xf32>
    %cst_39 = arith.constant dense<0.000000e+00> : vector<10x256xf32>
    %45 = tpu.matmul %44, %42, %cst_39 {dimension_numbers = #tpu.dot_dimension_numbers<[1], [0], [0], [1], [0, 0, 1, 1], [], []>} : vector<10x10xf32>, vector<10x256xf32>, vector<10x256xf32> -> vector<10x256xf32>
    %c6_40 = arith.constant 6 : index
    %c0_41 = arith.constant 0 : index
    %c0_42 = arith.constant 0 : index
    %46 = vector.load %arg2[%c6_40, %c0_41, %c0_42] : memref<20x10x1xf32, #tpu.memory_space<vmem>>, vector<1x10x1xf32>
    %47 = vector.shape_cast %46 : vector<1x10x1xf32> to vector<10x1xf32>
    %48 = vector.broadcast %47 : vector<10x1xf32> to vector<10x256xf32>
    %49 = arith.addf %45, %48 : vector<10x256xf32>
    %c7 = arith.constant 7 : index
    %c0_43 = arith.constant 0 : index
    %c0_44 = arith.constant 0 : index
    %50 = vector.load %arg1[%c7, %c0_43, %c0_44] : memref<20x10x10xf32, #tpu.memory_space<vmem>>, vector<1x10x10xf32>
    %51 = vector.shape_cast %50 : vector<1x10x10xf32> to vector<10x10xf32>
    %cst_45 = arith.constant dense<0.000000e+00> : vector<10x256xf32>
    %52 = tpu.matmul %51, %49, %cst_45 {dimension_numbers = #tpu.dot_dimension_numbers<[1], [0], [0], [1], [0, 0, 1, 1], [], []>} : vector<10x10xf32>, vector<10x256xf32>, vector<10x256xf32> -> vector<10x256xf32>
    %c7_46 = arith.constant 7 : index
    %c0_47 = arith.constant 0 : index
    %c0_48 = arith.constant 0 : index
    %53 = vector.load %arg2[%c7_46, %c0_47, %c0_48] : memref<20x10x1xf32, #tpu.memory_space<vmem>>, vector<1x10x1xf32>
    %54 = vector.shape_cast %53 : vector<1x10x1xf32> to vector<10x1xf32>
    %55 = vector.broadcast %54 : vector<10x1xf32> to vector<10x256xf32>
    %56 = arith.addf %52, %55 : vector<10x256xf32>
    %c8 = arith.constant 8 : index
    %c0_49 = arith.constant 0 : index
    %c0_50 = arith.constant 0 : index
    %57 = vector.load %arg1[%c8, %c0_49, %c0_50] : memref<20x10x10xf32, #tpu.memory_space<vmem>>, vector<1x10x10xf32>
    %58 = vector.shape_cast %57 : vector<1x10x10xf32> to vector<10x10xf32>
    %cst_51 = arith.constant dense<0.000000e+00> : vector<10x256xf32>
    %59 = tpu.matmul %58, %56, %cst_51 {dimension_numbers = #tpu.dot_dimension_numbers<[1], [0], [0], [1], [0, 0, 1, 1], [], []>} : vector<10x10xf32>, vector<10x256xf32>, vector<10x256xf32> -> vector<10x256xf32>
    %c8_52 = arith.constant 8 : index
    %c0_53 = arith.constant 0 : index
    %c0_54 = arith.constant 0 : index
    %60 = vector.load %arg2[%c8_52, %c0_53, %c0_54] : memref<20x10x1xf32, #tpu.memory_space<vmem>>, vector<1x10x1xf32>
    %61 = vector.shape_cast %60 : vector<1x10x1xf32> to vector<10x1xf32>
    %62 = vector.broadcast %61 : vector<10x1xf32> to vector<10x256xf32>
    %63 = arith.addf %59, %62 : vector<10x256xf32>
    %c9 = arith.constant 9 : index
    %c0_55 = arith.constant 0 : index
    %c0_56 = arith.constant 0 : index
    %64 = vector.load %arg1[%c9, %c0_55, %c0_56] : memref<20x10x10xf32, #tpu.memory_space<vmem>>, vector<1x10x10xf32>
    %65 = vector.shape_cast %64 : vector<1x10x10xf32> to vector<10x10xf32>
    %cst_57 = arith.constant dense<0.000000e+00> : vector<10x256xf32>
    %66 = tpu.matmul %65, %63, %cst_57 {dimension_numbers = #tpu.dot_dimension_numbers<[1], [0], [0], [1], [0, 0, 1, 1], [], []>} : vector<10x10xf32>, vector<10x256xf32>, vector<10x256xf32> -> vector<10x256xf32>
    %c9_58 = arith.constant 9 : index
    %c0_59 = arith.constant 0 : index
    %c0_60 = arith.constant 0 : index
    %67 = vector.load %arg2[%c9_58, %c0_59, %c0_60] : memref<20x10x1xf32, #tpu.memory_space<vmem>>, vector<1x10x1xf32>
    %68 = vector.shape_cast %67 : vector<1x10x1xf32> to vector<10x1xf32>
    %69 = vector.broadcast %68 : vector<10x1xf32> to vector<10x256xf32>
    %70 = arith.addf %66, %69 : vector<10x256xf32>
    %c10 = arith.constant 10 : index
    %c0_61 = arith.constant 0 : index
    %c0_62 = arith.constant 0 : index
    %71 = vector.load %arg1[%c10, %c0_61, %c0_62] : memref<20x10x10xf32, #tpu.memory_space<vmem>>, vector<1x10x10xf32>
    %72 = vector.shape_cast %71 : vector<1x10x10xf32> to vector<10x10xf32>
    %cst_63 = arith.constant dense<0.000000e+00> : vector<10x256xf32>
    %73 = tpu.matmul %72, %70, %cst_63 {dimension_numbers = #tpu.dot_dimension_numbers<[1], [0], [0], [1], [0, 0, 1, 1], [], []>} : vector<10x10xf32>, vector<10x256xf32>, vector<10x256xf32> -> vector<10x256xf32>
    %c10_64 = arith.constant 10 : index
    %c0_65 = arith.constant 0 : index
    %c0_66 = arith.constant 0 : index
    %74 = vector.load %arg2[%c10_64, %c0_65, %c0_66] : memref<20x10x1xf32, #tpu.memory_space<vmem>>, vector<1x10x1xf32>
    %75 = vector.shape_cast %74 : vector<1x10x1xf32> to vector<10x1xf32>
    %76 = vector.broadcast %75 : vector<10x1xf32> to vector<10x256xf32>
    %77 = arith.addf %73, %76 : vector<10x256xf32>
    %c11 = arith.constant 11 : index
    %c0_67 = arith.constant 0 : index
    %c0_68 = arith.constant 0 : index
    %78 = vector.load %arg1[%c11, %c0_67, %c0_68] : memref<20x10x10xf32, #tpu.memory_space<vmem>>, vector<1x10x10xf32>
    %79 = vector.shape_cast %78 : vector<1x10x10xf32> to vector<10x10xf32>
    %cst_69 = arith.constant dense<0.000000e+00> : vector<10x256xf32>
    %80 = tpu.matmul %79, %77, %cst_69 {dimension_numbers = #tpu.dot_dimension_numbers<[1], [0], [0], [1], [0, 0, 1, 1], [], []>} : vector<10x10xf32>, vector<10x256xf32>, vector<10x256xf32> -> vector<10x256xf32>
    %c11_70 = arith.constant 11 : index
    %c0_71 = arith.constant 0 : index
    %c0_72 = arith.constant 0 : index
    %81 = vector.load %arg2[%c11_70, %c0_71, %c0_72] : memref<20x10x1xf32, #tpu.memory_space<vmem>>, vector<1x10x1xf32>
    %82 = vector.shape_cast %81 : vector<1x10x1xf32> to vector<10x1xf32>
    %83 = vector.broadcast %82 : vector<10x1xf32> to vector<10x256xf32>
    %84 = arith.addf %80, %83 : vector<10x256xf32>
    %c12 = arith.constant 12 : index
    %c0_73 = arith.constant 0 : index
    %c0_74 = arith.constant 0 : index
    %85 = vector.load %arg1[%c12, %c0_73, %c0_74] : memref<20x10x10xf32, #tpu.memory_space<vmem>>, vector<1x10x10xf32>
    %86 = vector.shape_cast %85 : vector<1x10x10xf32> to vector<10x10xf32>
    %cst_75 = arith.constant dense<0.000000e+00> : vector<10x256xf32>
    %87 = tpu.matmul %86, %84, %cst_75 {dimension_numbers = #tpu.dot_dimension_numbers<[1], [0], [0], [1], [0, 0, 1, 1], [], []>} : vector<10x10xf32>, vector<10x256xf32>, vector<10x256xf32> -> vector<10x256xf32>
    %c12_76 = arith.constant 12 : index
    %c0_77 = arith.constant 0 : index
    %c0_78 = arith.constant 0 : index
    %88 = vector.load %arg2[%c12_76, %c0_77, %c0_78] : memref<20x10x1xf32, #tpu.memory_space<vmem>>, vector<1x10x1xf32>
    %89 = vector.shape_cast %88 : vector<1x10x1xf32> to vector<10x1xf32>
    %90 = vector.broadcast %89 : vector<10x1xf32> to vector<10x256xf32>
    %91 = arith.addf %87, %90 : vector<10x256xf32>
    %c13 = arith.constant 13 : index
    %c0_79 = arith.constant 0 : index
    %c0_80 = arith.constant 0 : index
    %92 = vector.load %arg1[%c13, %c0_79, %c0_80] : memref<20x10x10xf32, #tpu.memory_space<vmem>>, vector<1x10x10xf32>
    %93 = vector.shape_cast %92 : vector<1x10x10xf32> to vector<10x10xf32>
    %cst_81 = arith.constant dense<0.000000e+00> : vector<10x256xf32>
    %94 = tpu.matmul %93, %91, %cst_81 {dimension_numbers = #tpu.dot_dimension_numbers<[1], [0], [0], [1], [0, 0, 1, 1], [], []>} : vector<10x10xf32>, vector<10x256xf32>, vector<10x256xf32> -> vector<10x256xf32>
    %c13_82 = arith.constant 13 : index
    %c0_83 = arith.constant 0 : index
    %c0_84 = arith.constant 0 : index
    %95 = vector.load %arg2[%c13_82, %c0_83, %c0_84] : memref<20x10x1xf32, #tpu.memory_space<vmem>>, vector<1x10x1xf32>
    %96 = vector.shape_cast %95 : vector<1x10x1xf32> to vector<10x1xf32>
    %97 = vector.broadcast %96 : vector<10x1xf32> to vector<10x256xf32>
    %98 = arith.addf %94, %97 : vector<10x256xf32>
    %c14 = arith.constant 14 : index
    %c0_85 = arith.constant 0 : index
    %c0_86 = arith.constant 0 : index
    %99 = vector.load %arg1[%c14, %c0_85, %c0_86] : memref<20x10x10xf32, #tpu.memory_space<vmem>>, vector<1x10x10xf32>
    %100 = vector.shape_cast %99 : vector<1x10x10xf32> to vector<10x10xf32>
    %cst_87 = arith.constant dense<0.000000e+00> : vector<10x256xf32>
    %101 = tpu.matmul %100, %98, %cst_87 {dimension_numbers = #tpu.dot_dimension_numbers<[1], [0], [0], [1], [0, 0, 1, 1], [], []>} : vector<10x10xf32>, vector<10x256xf32>, vector<10x256xf32> -> vector<10x256xf32>
    %c14_88 = arith.constant 14 : index
    %c0_89 = arith.constant 0 : index
    %c0_90 = arith.constant 0 : index
    %102 = vector.load %arg2[%c14_88, %c0_89, %c0_90] : memref<20x10x1xf32, #tpu.memory_space<vmem>>, vector<1x10x1xf32>
    %103 = vector.shape_cast %102 : vector<1x10x1xf32> to vector<10x1xf32>
    %104 = vector.broadcast %103 : vector<10x1xf32> to vector<10x256xf32>
    %105 = arith.addf %101, %104 : vector<10x256xf32>
    %c15 = arith.constant 15 : index
    %c0_91 = arith.constant 0 : index
    %c0_92 = arith.constant 0 : index
    %106 = vector.load %arg1[%c15, %c0_91, %c0_92] : memref<20x10x10xf32, #tpu.memory_space<vmem>>, vector<1x10x10xf32>
    %107 = vector.shape_cast %106 : vector<1x10x10xf32> to vector<10x10xf32>
    %cst_93 = arith.constant dense<0.000000e+00> : vector<10x256xf32>
    %108 = tpu.matmul %107, %105, %cst_93 {dimension_numbers = #tpu.dot_dimension_numbers<[1], [0], [0], [1], [0, 0, 1, 1], [], []>} : vector<10x10xf32>, vector<10x256xf32>, vector<10x256xf32> -> vector<10x256xf32>
    %c15_94 = arith.constant 15 : index
    %c0_95 = arith.constant 0 : index
    %c0_96 = arith.constant 0 : index
    %109 = vector.load %arg2[%c15_94, %c0_95, %c0_96] : memref<20x10x1xf32, #tpu.memory_space<vmem>>, vector<1x10x1xf32>
    %110 = vector.shape_cast %109 : vector<1x10x1xf32> to vector<10x1xf32>
    %111 = vector.broadcast %110 : vector<10x1xf32> to vector<10x256xf32>
    %112 = arith.addf %108, %111 : vector<10x256xf32>
    %c16 = arith.constant 16 : index
    %c0_97 = arith.constant 0 : index
    %c0_98 = arith.constant 0 : index
    %113 = vector.load %arg1[%c16, %c0_97, %c0_98] : memref<20x10x10xf32, #tpu.memory_space<vmem>>, vector<1x10x10xf32>
    %114 = vector.shape_cast %113 : vector<1x10x10xf32> to vector<10x10xf32>
    %cst_99 = arith.constant dense<0.000000e+00> : vector<10x256xf32>
    %115 = tpu.matmul %114, %112, %cst_99 {dimension_numbers = #tpu.dot_dimension_numbers<[1], [0], [0], [1], [0, 0, 1, 1], [], []>} : vector<10x10xf32>, vector<10x256xf32>, vector<10x256xf32> -> vector<10x256xf32>
    %c16_100 = arith.constant 16 : index
    %c0_101 = arith.constant 0 : index
    %c0_102 = arith.constant 0 : index
    %116 = vector.load %arg2[%c16_100, %c0_101, %c0_102] : memref<20x10x1xf32, #tpu.memory_space<vmem>>, vector<1x10x1xf32>
    %117 = vector.shape_cast %116 : vector<1x10x1xf32> to vector<10x1xf32>
    %118 = vector.broadcast %117 : vector<10x1xf32> to vector<10x256xf32>
    %119 = arith.addf %115, %118 : vector<10x256xf32>
    %c17 = arith.constant 17 : index
    %c0_103 = arith.constant 0 : index
    %c0_104 = arith.constant 0 : index
    %120 = vector.load %arg1[%c17, %c0_103, %c0_104] : memref<20x10x10xf32, #tpu.memory_space<vmem>>, vector<1x10x10xf32>
    %121 = vector.shape_cast %120 : vector<1x10x10xf32> to vector<10x10xf32>
    %cst_105 = arith.constant dense<0.000000e+00> : vector<10x256xf32>
    %122 = tpu.matmul %121, %119, %cst_105 {dimension_numbers = #tpu.dot_dimension_numbers<[1], [0], [0], [1], [0, 0, 1, 1], [], []>} : vector<10x10xf32>, vector<10x256xf32>, vector<10x256xf32> -> vector<10x256xf32>
    %c17_106 = arith.constant 17 : index
    %c0_107 = arith.constant 0 : index
    %c0_108 = arith.constant 0 : index
    %123 = vector.load %arg2[%c17_106, %c0_107, %c0_108] : memref<20x10x1xf32, #tpu.memory_space<vmem>>, vector<1x10x1xf32>
    %124 = vector.shape_cast %123 : vector<1x10x1xf32> to vector<10x1xf32>
    %125 = vector.broadcast %124 : vector<10x1xf32> to vector<10x256xf32>
    %126 = arith.addf %122, %125 : vector<10x256xf32>
    %c18 = arith.constant 18 : index
    %c0_109 = arith.constant 0 : index
    %c0_110 = arith.constant 0 : index
    %127 = vector.load %arg1[%c18, %c0_109, %c0_110] : memref<20x10x10xf32, #tpu.memory_space<vmem>>, vector<1x10x10xf32>
    %128 = vector.shape_cast %127 : vector<1x10x10xf32> to vector<10x10xf32>
    %cst_111 = arith.constant dense<0.000000e+00> : vector<10x256xf32>
    %129 = tpu.matmul %128, %126, %cst_111 {dimension_numbers = #tpu.dot_dimension_numbers<[1], [0], [0], [1], [0, 0, 1, 1], [], []>} : vector<10x10xf32>, vector<10x256xf32>, vector<10x256xf32> -> vector<10x256xf32>
    %c18_112 = arith.constant 18 : index
    %c0_113 = arith.constant 0 : index
    %c0_114 = arith.constant 0 : index
    %130 = vector.load %arg2[%c18_112, %c0_113, %c0_114] : memref<20x10x1xf32, #tpu.memory_space<vmem>>, vector<1x10x1xf32>
    %131 = vector.shape_cast %130 : vector<1x10x1xf32> to vector<10x1xf32>
    %132 = vector.broadcast %131 : vector<10x1xf32> to vector<10x256xf32>
    %133 = arith.addf %129, %132 : vector<10x256xf32>
    %c19 = arith.constant 19 : index
    %c0_115 = arith.constant 0 : index
    %c0_116 = arith.constant 0 : index
    %134 = vector.load %arg1[%c19, %c0_115, %c0_116] : memref<20x10x10xf32, #tpu.memory_space<vmem>>, vector<1x10x10xf32>
    %135 = vector.shape_cast %134 : vector<1x10x10xf32> to vector<10x10xf32>
    %cst_117 = arith.constant dense<0.000000e+00> : vector<10x256xf32>
    %136 = tpu.matmul %135, %133, %cst_117 {dimension_numbers = #tpu.dot_dimension_numbers<[1], [0], [0], [1], [0, 0, 1, 1], [], []>} : vector<10x10xf32>, vector<10x256xf32>, vector<10x256xf32> -> vector<10x256xf32>
    %c19_118 = arith.constant 19 : index
    %c0_119 = arith.constant 0 : index
    %c0_120 = arith.constant 0 : index
    %137 = vector.load %arg2[%c19_118, %c0_119, %c0_120] : memref<20x10x1xf32, #tpu.memory_space<vmem>>, vector<1x10x1xf32>
    %138 = vector.shape_cast %137 : vector<1x10x1xf32> to vector<10x1xf32>
    %139 = vector.broadcast %138 : vector<10x1xf32> to vector<10x256xf32>
    %140 = arith.addf %136, %139 : vector<10x256xf32>
    %c0_121 = arith.constant 0 : index
    %c0_122 = arith.constant 0 : index
    %141 = vector.load %arg4[%c0_121, %c0_122] : memref<10x256xf32, #tpu.memory_space<vmem>>, vector<10x256xf32>
    tpu.vector_store %arg4[%c0_121, %c0_122], %140 {strides = array<i32>} : memref<10x256xf32, #tpu.memory_space<vmem>>, vector<10x256xf32>,
    return
  }
  func.func @transform_0(%arg0: i32) -> (i32, i32, i32) {
    %c0_i32 = arith.constant 0 : i32
    %c0_i32_0 = arith.constant 0 : i32
    %c0_i32_1 = arith.constant 0 : i32
    %c0_i32_2 = arith.constant 0 : i32
    return %c0_i32, %c0_i32_0, %c0_i32_1 : i32, i32, i32
  }
  func.func @transform_1(%arg0: i32) -> (i32, i32, i32) {
    %c0_i32 = arith.constant 0 : i32
    %c0_i32_0 = arith.constant 0 : i32
    %c0_i32_1 = arith.constant 0 : i32
    %c0_i32_2 = arith.constant 0 : i32
    return %c0_i32, %c0_i32_0, %c0_i32_1 : i32, i32, i32
  }
  func.func @transform_2(%arg0: i32) -> (i32, i32) {
    %c0_i32 = arith.constant 0 : i32
    %c0_i32_0 = arith.constant 0 : i32
    return %c0_i32, %arg0 : i32, i32
  }
  func.func @transform_3(%arg0: i32) -> (i32, i32) {
    %c0_i32 = arith.constant 0 : i32
    %c0_i32_0 = arith.constant 0 : i32
    return %c0_i32, %arg0 : i32, i32
  }
}

</mosaic_0001>

<llo_original>
// kernel: tpu_custom_call.1
$region0: #{tpu_custom_call.1}
  #allocation0 [shape = 'u32[]', space=smem, size = 0x4, offset = 0x4, fixed_abs, tag = 'smem constant byte address 0x4 - core index']
  #allocation1 [shape = 'u32[144,128]{1,0:T(1,128)}', space=vmem, size = 0x12000, scoped, tag = 'internal scratch']
  %s0 = inlined_call_operand.vmem [shape: f32[20,10,10], index: 0, kind: input, shape index: {}]
  %s1 = inlined_call_operand.vmem [shape: f32[20,10,1], index: 1, kind: input, shape index: {}]
  %s2 = inlined_call_operand.vmem [shape: f32[10,256], index: 2, kind: input, shape index: {}]
  %s3 = inlined_call_operand.hbm [shape: f32[10,256], index: 3, kind: output, shape index: {}]
  %s4 = sld [smem:[#allocation0]]
  $region22: #{tpu_custom_call.1} parent=0
    _
  %s6 = ssub.s32 1, %s4
  %s7 = scalar_select 0, %s6, %s4
  $region1: #{tpu_custom_call.1} parent=0
    #allocation2 [shape = 'u8[16384]{0}', space=vmem, size = 0x4000, scoped, tag = 'output window, operand 0, single buffered']
    #allocation3 [shape = 's32[1]{0}', space=sflag, size = 0x4, scoped, tag = 'scoped memory for tpu_custom_call.1']
    %8 = vsyncpa [#allocation3], 0
    // Predicated region
    $region2: #{tpu_custom_call.1} parent=1 // pred_check
      _
    $region3: #{tpu_custom_call.1} parent=1 // pred_check_branch
      %10 = sbr.rel (0) target = $region5
    $region4: #{tpu_custom_call.1} parent=1 // pred_region
      _
    $region5: #{tpu_custom_call.1} parent=1 // pred_fallthru
      _
    // Predicated region
    $region6: #{tpu_custom_call.1} parent=1 // pred_check
      _
    $region7: #{tpu_custom_call.1} parent=1 // pred_check_branch
      %12 = sbr.rel (0) target = $region9
    $region8: #{tpu_custom_call.1} parent=1 // pred_region
      _
    $region9: #{tpu_custom_call.1} parent=1 // pred_fallthru
      _
    // Predicated region
    $region10: #{tpu_custom_call.1} parent=1 // pred_check
      _
    $region11: #{tpu_custom_call.1} parent=1 // pred_check_branch
      %14 = sbr.rel (0) target = $region13
    $region12: #{tpu_custom_call.1} parent=1 // pred_region
      _
    $region13: #{tpu_custom_call.1} parent=1 // pred_fallthru
      _
    %v15 = vld [vmem:[%s2] sm:$0xff]
    %v16 = vld [vmem:[%s2 + $0x8] sm:$0xff]
    %v17 = vld [vmem:[%s2 + $0x10] sm:$0x3]
    %v18 = vld [vmem:[%s2 + $0x18] sm:$0x3]
    %v19 = vld [vmem:[%s0] sm:$0xff]
    %v20 = vld [vmem:[%s0 + $0x8] sm:$0x3]
    %v21 = vld [vmem:[%s1] sm:$0xff]
    %v22 = vld [vmem:[%s1 + $0x8] sm:$0x3]
    %24 = vset.pattern.permute.xlu0 0
    %25 = vperm.xlu0 %24, %v21
    %v26 = vpop.permute.xlu0 %25
    %29 = vset.pattern.permute.xlu0 0
    %30 = vperm.xlu0 %29, %v22
    %v31 = vpop.permute.xlu0 %30
    %vm33 = vcmask 80896
    %v35 = vsel %vm33, %v19, 0
    %v38 = vsel %vm33, %v20, 0
    %vm40 = vcmask 1041408
    %v42 = vsel %vm40, %v17, 0
    %v45 = vsel %vm40, %v18, 0
    %47 = vmatprep.subr.mxu0 %v16
    %48 = vmatpush1.msra.mxu0 %v15
    %49 = vmatprep.subr.mxu0 %v45
    %50 = vmatpush1.msra.mxu0 %v42
    %51 = vmatprep.subr.mxu0 0.0
    %52 = vmatpush1.msra.mxu0 0.0
    %53 = vmatprep.subr.mxu0 0.0
    %54 = vmatpush1.msra.mxu0 0.0
    %55 = vmatprep.subr.mxu0 0.0
    %56 = vmatpush1.msra.mxu0 0.0
    %57 = vmatprep.subr.mxu0 0.0
    %58 = vmatpush1.msra.mxu0 0.0
    %59 = vmatprep.subr.mxu0 0.0
    %60 = vmatpush1.msra.mxu0 0.0
    %61 = vmatprep.subr.mxu0 0.0
    %62 = vmatpush1.msra.mxu0 0.0
    %63 = vmatprep.subr.mxu0 0.0
    %64 = vmatpush1.msra.mxu0 0.0
    %65 = vmatprep.subr.mxu0 0.0
    %66 = vmatpush1.msra.mxu0 0.0
    %67 = vmatprep.subr.mxu0 0.0
    %68 = vmatpush1.msra.mxu0 0.0
    %69 = vmatprep.subr.mxu0 0.0
    %70 = vmatpush1.msra.mxu0 0.0
    %71 = vmatprep.subr.mxu0 0.0
    %72 = vmatpush1.msra.mxu0 0.0
    %73 = vmatprep.subr.mxu0 0.0
    %74 = vmatpush1.msra.mxu0 0.0
    %75 = vmatprep.subr.mxu0 0.0
    %76 = vmatpush1.msra.mxu0 0.0
    %77 = vmatprep.subr.mxu0 0.0
    %78 = vmatpush1.msra.mxu0 0.0
    %79 = vmatprep.subr.mxu0 0.0
    %80 = vmatpush1.msra.mxu0 0.0
    %81 = vmatprep.subr.mxu0 0.0
    %82 = vmatpush1.msra.mxu0 0.0
    %83 = vmatprep.subr.mxu0 0.0
    %84 = vmatpush1.msra.mxu0 0.0
    %85 = vmatprep.subr.mxu0 0.0
    %86 = vmatpush1.msra.mxu0 0.0
    %87 = vmatprep.subr.mxu0 0.0
    %88 = vmatpush1.msra.mxu0 0.0
    %89 = vmatprep.subr.mxu0 0.0
    %90 = vmatpush1.msra.mxu0 0.0
    %91 = vmatprep.subr.mxu0 0.0
    %92 = vmatpush1.msra.mxu0 0.0
    %93 = vmatprep.subr.mxu0 0.0
    %94 = vmatpush1.msra.mxu0 0.0
    %95 = vmatprep.subr.mxu0 0.0
    %96 = vmatpush1.msra.mxu0 0.0
    %97 = vmatprep.subr.mxu0 0.0
    %98 = vmatpush1.msra.mxu0 0.0
    %99 = vmatprep.subr.mxu0 0.0
    %100 = vmatpush1.msra.mxu0 0.0
    %101 = vmatprep.subr.mxu0 0.0
    %102 = vmatpush1.msra.mxu0 0.0
    %103 = vmatprep.subr.mxu0 0.0
    %104 = vmatpush1.msra.mxu0 0.0
    %105 = vmatprep.subr.mxu0 0.0
    %106 = vmatpush1.msra.mxu0 0.0
    %107 = vmatprep.subr.mxu0 0.0
    %108 = vmatpush1.msra.mxu0 0.0
    %109 = vmatprep.subr.mxu0 0.0
    %110 = vmatpush1.msra.mxu0 0.0
    %111 = vmatprep.mubr.f32.mxu0 0.0
    %112 = vmatmul.mubr.f32.gmra.mrb[0].mxu0 %v35
    %v113 = vpop.f32.mrb[0].mxu0
    %v114 = vadd.f32 %v26, %v113
    %v115 = vpop.f32.mrb[0].mxu0
    %v116 = vadd.f32 %v26, %v115
    %117 = vmatprep.mubr.f32.mxu0 0.0
    %118 = vmatmul.mubr.f32.gmra.mrb[0].mxu0 %v38
    %v119 = vpop.f32.mrb[0].mxu0
    %v120 = vadd.f32 %v31, %v119
    %v121 = vpop.f32.mrb[0].mxu0
    %v122 = vadd.f32 %v31, %v121
    %123 = vdwg.mxu0
    %s124 = scalar_lea.vmem %s0, 16
    %v125 = vld [vmem:[%s124] sm:$0xff]
    %v126 = vld [vmem:[%s124 + $0x8] sm:$0x3]
    %s127 = scalar_lea.vmem %s1, 16
    %v128 = vld [vmem:[%s127] sm:$0xff]
    %v129 = vld [vmem:[%s127 + $0x8] sm:$0x3]
    %131 = vset.pattern.permute.xlu0 0
    %132 = vperm.xlu0 %131, %v128
    %v133 = vpop.permute.xlu0 %132
    %136 = vset.pattern.permute.xlu0 0
    %137 = vperm.xlu0 %136, %v129
    %v138 = vpop.permute.xlu0 %137
    %v141 = vsel %vm33, %v125, 0
    %v144 = vsel %vm33, %v126, 0
    %v147 = vsel %vm40, %v120, 0
    %v150 = vsel %vm40, %v122, 0
    %152 = vmatprep.subr.mxu0 %v116
    %153 = vmatpush1.msra.mxu0 %v114
    %154 = vmatprep.subr.mxu0 %v150
    %155 = vmatpush1.msra.mxu0 %v147
    %156 = vmatprep.subr.mxu0 0.0
    %157 = vmatpush1.msra.mxu0 0.0
    %158 = vmatprep.subr.mxu0 0.0
    %159 = vmatpush1.msra.mxu0 0.0
    %160 = vmatprep.subr.mxu0 0.0
    %161 = vmatpush1.msra.mxu0 0.0
    %162 = vmatprep.subr.mxu0 0.0
    %163 = vmatpush1.msra.mxu0 0.0
    %164 = vmatprep.subr.mxu0 0.0
    %165 = vmatpush1.msra.mxu0 0.0
    %166 = vmatprep.subr.mxu0 0.0
    %167 = vmatpush1.msra.mxu0 0.0
    %168 = vmatprep.subr.mxu0 0.0
    %169 = vmatpush1.msra.mxu0 0.0
    %170 = vmatprep.subr.mxu0 0.0
    %171 = vmatpush1.msra.mxu0 0.0
    %172 = vmatprep.subr.mxu0 0.0
    %173 = vmatpush1.msra.mxu0 0.0
    %174 = vmatprep.subr.mxu0 0.0
    %175 = vmatpush1.msra.mxu0 0.0
    %176 = vmatprep.subr.mxu0 0.0
    %177 = vmatpush1.msra.mxu0 0.0
    %178 = vmatprep.subr.mxu0 0.0
    %179 = vmatpush1.msra.mxu0 0.0
    %180 = vmatprep.subr.mxu0 0.0
    %181 = vmatpush1.msra.mxu0 0.0
    %182 = vmatprep.subr.mxu0 0.0
    %183 = vmatpush1.msra.mxu0 0.0
    %184 = vmatprep.subr.mxu0 0.0
    %185 = vmatpush1.msra.mxu0 0.0
    %186 = vmatprep.subr.mxu0 0.0
    %187 = vmatpush1.msra.mxu0 0.0
    %188 = vmatprep.subr.mxu0 0.0
    %189 = vmatpush1.msra.mxu0 0.0
    %190 = vmatprep.subr.mxu0 0.0
    %191 = vmatpush1.msra.mxu0 0.0
    %192 = vmatprep.subr.mxu0 0.0
    %193 = vmatpush1.msra.mxu0 0.0
    %194 = vmatprep.subr.mxu0 0.0
    %195 = vmatpush1.msra.mxu0 0.0
    %196 = vmatprep.subr.mxu0 0.0
    %197 = vmatpush1.msra.mxu0 0.0
    %198 = vmatprep.subr.mxu0 0.0
    %199 = vmatpush1.msra.mxu0 0.0
    %200 = vmatprep.subr.mxu0 0.0
    %201 = vmatpush1.msra.mxu0 0.0
    %202 = vmatprep.subr.mxu0 0.0
    %203 = vmatpush1.msra.mxu0 0.0
    %204 = vmatprep.subr.mxu0 0.0
    %205 = vmatpush1.msra.mxu0 0.0
    %206 = vmatprep.subr.mxu0 0.0
    %207 = vmatpush1.msra.mxu0 0.0
    %208 = vmatprep.subr.mxu0 0.0
    %209 = vmatpush1.msra.mxu0 0.0
    %210 = vmatprep.subr.mxu0 0.0
    %211 = vmatpush1.msra.mxu0 0.0
    %212 = vmatprep.subr.mxu0 0.0
    %213 = vmatpush1.msra.mxu0 0.0
    %214 = vmatprep.subr.mxu0 0.0
    %215 = vmatpush1.msra.mxu0 0.0
    %216 = vmatprep.mubr.f32.mxu0 0.0
    %217 = vmatmul.mubr.f32.gmra.mrb[0].mxu0 %v141
    %v218 = vpop.f32.mrb[0].mxu0
    %v219 = vadd.f32 %v133, %v218
    %v220 = vpop.f32.mrb[0].mxu0
    %v221 = vadd.f32 %v133, %v220
    %222 = vmatprep.mubr.f32.mxu0 0.0
    %223 = vmatmul.mubr.f32.gmra.mrb[0].mxu0 %v144
    %v224 = vpop.f32.mrb[0].mxu0
    %v225 = vadd.f32 %v138, %v224
    %v226 = vpop.f32.mrb[0].mxu0
    %v227 = vadd.f32 %v138, %v226
    %228 = vdwg.mxu0
    %s229 = scalar_lea.vmem %s0, 32
    %v230 = vld [vmem:[%s229] sm:$0xff]
    %v231 = vld [vmem:[%s229 + $0x8] sm:$0x3]
    %s232 = scalar_lea.vmem %s1, 32
    %v233 = vld [vmem:[%s232] sm:$0xff]
    %v234 = vld [vmem:[%s232 + $0x8] sm:$0x3]
    %236 = vset.pattern.permute.xlu0 0
    %237 = vperm.xlu0 %236, %v233
    %v238 = vpop.permute.xlu0 %237
    %241 = vset.pattern.permute.xlu0 0
    %242 = vperm.xlu0 %241, %v234
    %v243 = vpop.permute.xlu0 %242
    %v246 = vsel %vm33, %v230, 0
    %v249 = vsel %vm33, %v231, 0
    %v252 = vsel %vm40, %v225, 0
    %v255 = vsel %vm40, %v227, 0
    %257 = vmatprep.subr.mxu0 %v221
    %258 = vmatpush1.msra.mxu0 %v219
    %259 = vmatprep.subr.mxu0 %v255
    %260 = vmatpush1.msra.mxu0 %v252
    %261 = vmatprep.subr.mxu0 0.0
    %262 = vmatpush1.msra.mxu0 0.0
    %263 = vmatprep.subr.mxu0 0.0
    %264 = vmatpush1.msra.mxu0 0.0
    %265 = vmatprep.subr.mxu0 0.0
    %266 = vmatpush1.msra.mxu0 0.0
    %267 = vmatprep.subr.mxu0 0.0
    %268 = vmatpush1.msra.mxu0 0.0
    %269 = vmatprep.subr.mxu0 0.0
    %270 = vmatpush1.msra.mxu0 0.0
    %271 = vmatprep.subr.mxu0 0.0
    %272 = vmatpush1.msra.mxu0 0.0
    %273 = vmatprep.subr.mxu0 0.0
    %274 = vmatpush1.msra.mxu0 0.0
    %275 = vmatprep.subr.mxu0 0.0
    %276 = vmatpush1.msra.mxu0 0.0
    %277 = vmatprep.subr.mxu0 0.0
    %278 = vmatpush1.msra.mxu0 0.0
    %279 = vmatprep.subr.mxu0 0.0
    %280 = vmatpush1.msra.mxu0 0.0
    %281 = vmatprep.subr.mxu0 0.0
    %282 = vmatpush1.msra.mxu0 0.0
    %283 = vmatprep.subr.mxu0 0.0
    %284 = vmatpush1.msra.mxu0 0.0
    %285 = vmatprep.subr.mxu0 0.0
    %286 = vmatpush1.msra.mxu0 0.0
    %287 = vmatprep.subr.mxu0 0.0
    %288 = vmatpush1.msra.mxu0 0.0
    %289 = vmatprep.subr.mxu0 0.0
    %290 = vmatpush1.msra.mxu0 0.0
    %291 = vmatprep.subr.mxu0 0.0
    %292 = vmatpush1.msra.mxu0 0.0
    %293 = vmatprep.subr.mxu0 0.0
    %294 = vmatpush1.msra.mxu0 0.0
    %295 = vmatprep.subr.mxu0 0.0
    %296 = vmatpush1.msra.mxu0 0.0
    %297 = vmatprep.subr.mxu0 0.0
    %298 = vmatpush1.msra.mxu0 0.0
    %299 = vmatprep.subr.mxu0 0.0
    %300 = vmatpush1.msra.mxu0 0.0
    %301 = vmatprep.subr.mxu0 0.0
    %302 = vmatpush1.msra.mxu0 0.0
    %303 = vmatprep.subr.mxu0 0.0
    %304 = vmatpush1.msra.mxu0 0.0
    %305 = vmatprep.subr.mxu0 0.0
    %306 = vmatpush1.msra.mxu0 0.0
    %307 = vmatprep.subr.mxu0 0.0
    %308 = vmatpush1.msra.mxu0 0.0
    %309 = vmatprep.subr.mxu0 0.0
    %310 = vmatpush1.msra.mxu0 0.0
    %311 = vmatprep.subr.mxu0 0.0
    %312 = vmatpush1.msra.mxu0 0.0
    %313 = vmatprep.subr.mxu0 0.0
    %314 = vmatpush1.msra.mxu0 0.0
    %315 = vmatprep.subr.mxu0 0.0
    %316 = vmatpush1.msra.mxu0 0.0
    %317 = vmatprep.subr.mxu0 0.0
    %318 = vmatpush1.msra.mxu0 0.0
    %319 = vmatprep.subr.mxu0 0.0
    %320 = vmatpush1.msra.mxu0 0.0
    %321 = vmatprep.mubr.f32.mxu0 0.0
    %322 = vmatmul.mubr.f32.gmra.mrb[0].mxu0 %v246
    %v323 = vpop.f32.mrb[0].mxu0
    %v324 = vadd.f32 %v238, %v323
    %v325 = vpop.f32.mrb[0].mxu0
    %v326 = vadd.f32 %v238, %v325
    %327 = vmatprep.mubr.f32.mxu0 0.0
    %328 = vmatmul.mubr.f32.gmra.mrb[0].mxu0 %v249
    %v329 = vpop.f32.mrb[0].mxu0
    %v330 = vadd.f32 %v243, %v329
    %v331 = vpop.f32.mrb[0].mxu0
    %v332 = vadd.f32 %v243, %v331
    %333 = vdwg.mxu0
    %s334 = scalar_lea.vmem %s0, 48
    %v335 = vld [vmem:[%s334] sm:$0xff]
    %v336 = vld [vmem:[%s334 + $0x8] sm:$0x3]
    %s337 = scalar_lea.vmem %s1, 48
    %v338 = vld [vmem:[%s337] sm:$0xff]
    %v339 = vld [vmem:[%s337 + $0x8] sm:$0x3]
    %341 = vset.pattern.permute.xlu0 0
    %342 = vperm.xlu0 %341, %v338
    %v343 = vpop.permute.xlu0 %342
    %346 = vset.pattern.permute.xlu0 0
    %347 = vperm.xlu0 %346, %v339
    %v348 = vpop.permute.xlu0 %347
    %v351 = vsel %vm33, %v335, 0
    %v354 = vsel %vm33, %v336, 0
    %v357 = vsel %vm40, %v330, 0
    %v360 = vsel %vm40, %v332, 0
    %362 = vmatprep.subr.mxu0 %v326
    %363 = vmatpush1.msra.mxu0 %v324
    %364 = vmatprep.subr.mxu0 %v360
    %365 = vmatpush1.msra.mxu0 %v357
    %366 = vmatprep.subr.mxu0 0.0
    %367 = vmatpush1.msra.mxu0 0.0
    %368 = vmatprep.subr.mxu0 0.0
    %369 = vmatpush1.msra.mxu0 0.0
    %370 = vmatprep.subr.mxu0 0.0
    %371 = vmatpush1.msra.mxu0 0.0
    %372 = vmatprep.subr.mxu0 0.0
    %373 = vmatpush1.msra.mxu0 0.0
    %374 = vmatprep.subr.mxu0 0.0
    %375 = vmatpush1.msra.mxu0 0.0
    %376 = vmatprep.subr.mxu0 0.0
    %377 = vmatpush1.msra.mxu0 0.0
    %378 = vmatprep.subr.mxu0 0.0
    %379 = vmatpush1.msra.mxu0 0.0
    %380 = vmatprep.subr.mxu0 0.0
    %381 = vmatpush1.msra.mxu0 0.0
    %382 = vmatprep.subr.mxu0 0.0
    %383 = vmatpush1.msra.mxu0 0.0
    %384 = vmatprep.subr.mxu0 0.0
    %385 = vmatpush1.msra.mxu0 0.0
    %386 = vmatprep.subr.mxu0 0.0
    %387 = vmatpush1.msra.mxu0 0.0
    %388 = vmatprep.subr.mxu0 0.0
    %389 = vmatpush1.msra.mxu0 0.0
    %390 = vmatprep.subr.mxu0 0.0
    %391 = vmatpush1.msra.mxu0 0.0
    %392 = vmatprep.subr.mxu0 0.0
    %393 = vmatpush1.msra.mxu0 0.0
    %394 = vmatprep.subr.mxu0 0.0
    %395 = vmatpush1.msra.mxu0 0.0
    %396 = vmatprep.subr.mxu0 0.0
    %397 = vmatpush1.msra.mxu0 0.0
    %398 = vmatprep.subr.mxu0 0.0
    %399 = vmatpush1.msra.mxu0 0.0
    %400 = vmatprep.subr.mxu0 0.0
    %401 = vmatpush1.msra.mxu0 0.0
    %402 = vmatprep.subr.mxu0 0.0
    %403 = vmatpush1.msra.mxu0 0.0
    %404 = vmatprep.subr.mxu0 0.0
    %405 = vmatpush1.msra.mxu0 0.0
    %406 = vmatprep.subr.mxu0 0.0
    %407 = vmatpush1.msra.mxu0 0.0
    %408 = vmatprep.subr.mxu0 0.0
    %409 = vmatpush1.msra.mxu0 0.0
    %410 = vmatprep.subr.mxu0 0.0
    %411 = vmatpush1.msra.mxu0 0.0
    %412 = vmatprep.subr.mxu0 0.0
    %413 = vmatpush1.msra.mxu0 0.0
    %414 = vmatprep.subr.mxu0 0.0
    %415 = vmatpush1.msra.mxu0 0.0
    %416 = vmatprep.subr.mxu0 0.0
    %417 = vmatpush1.msra.mxu0 0.0
    %418 = vmatprep.subr.mxu0 0.0
    %419 = vmatpush1.msra.mxu0 0.0
    %420 = vmatprep.subr.mxu0 0.0
    %421 = vmatpush1.msra.mxu0 0.0
    %422 = vmatprep.subr.mxu0 0.0
    %423 = vmatpush1.msra.mxu0 0.0
    %424 = vmatprep.subr.mxu0 0.0
    %425 = vmatpush1.msra.mxu0 0.0
    %426 = vmatprep.mubr.f32.mxu0 0.0
    %427 = vmatmul.mubr.f32.gmra.mrb[0].mxu0 %v351
    %v428 = vpop.f32.mrb[0].mxu0
    %v429 = vadd.f32 %v343, %v428
    %v430 = vpop.f32.mrb[0].mxu0
    %v431 = vadd.f32 %v343, %v430
    %432 = vmatprep.mubr.f32.mxu0 0.0
    %433 = vmatmul.mubr.f32.gmra.mrb[0].mxu0 %v354
    %v434 = vpop.f32.mrb[0].mxu0
    %v435 = vadd.f32 %v348, %v434
    %v436 = vpop.f32.mrb[0].mxu0
    %v437 = vadd.f32 %v348, %v436
    %438 = vdwg.mxu0
    %s439 = scalar_lea.vmem %s0, 64
    %v440 = vld [vmem:[%s439] sm:$0xff]
    %v441 = vld [vmem:[%s439 + $0x8] sm:$0x3]
    %s442 = scalar_lea.vmem %s1, 64
    %v443 = vld [vmem:[%s442] sm:$0xff]
    %v444 = vld [vmem:[%s442 + $0x8] sm:$0x3]
    %446 = vset.pattern.permute.xlu0 0
    %447 = vperm.xlu0 %446, %v443
    %v448 = vpop.permute.xlu0 %447
    %451 = vset.pattern.permute.xlu0 0
    %452 = vperm.xlu0 %451, %v444
    %v453 = vpop.permute.xlu0 %452
    %v456 = vsel %vm33, %v440, 0
    %v459 = vsel %vm33, %v441, 0
    %v462 = vsel %vm40, %v435, 0
    %v465 = vsel %vm40, %v437, 0
    %467 = vmatprep.subr.mxu0 %v431
    %468 = vmatpush1.msra.mxu0 %v429
    %469 = vmatprep.subr.mxu0 %v465
    %470 = vmatpush1.msra.mxu0 %v462
    %471 = vmatprep.subr.mxu0 0.0
    %472 = vmatpush1.msra.mxu0 0.0
    %473 = vmatprep.subr.mxu0 0.0
    %474 = vmatpush1.msra.mxu0 0.0
    %475 = vmatprep.subr.mxu0 0.0
    %476 = vmatpush1.msra.mxu0 0.0
    %477 = vmatprep.subr.mxu0 0.0
    %478 = vmatpush1.msra.mxu0 0.0
    %479 = vmatprep.subr.mxu0 0.0
    %480 = vmatpush1.msra.mxu0 0.0
    %481 = vmatprep.subr.mxu0 0.0
    %482 = vmatpush1.msra.mxu0 0.0
    %483 = vmatprep.subr.mxu0 0.0
    %484 = vmatpush1.msra.mxu0 0.0
    %485 = vmatprep.subr.mxu0 0.0
    %486 = vmatpush1.msra.mxu0 0.0
    %487 = vmatprep.subr.mxu0 0.0
    %488 = vmatpush1.msra.mxu0 0.0
    %489 = vmatprep.subr.mxu0 0.0
    %490 = vmatpush1.msra.mxu0 0.0
    %491 = vmatprep.subr.mxu0 0.0
    %492 = vmatpush1.msra.mxu0 0.0
    %493 = vmatprep.subr.mxu0 0.0
    %494 = vmatpush1.msra.mxu0 0.0
    %495 = vmatprep.subr.mxu0 0.0
    %496 = vmatpush1.msra.mxu0 0.0
    %497 = vmatprep.subr.mxu0 0.0
    %498 = vmatpush1.msra.mxu0 0.0
    %499 = vmatprep.subr.mxu0 0.0
    %500 = vmatpush1.msra.mxu0 0.0
    %501 = vmatprep.subr.mxu0 0.0
    %502 = vmatpush1.msra.mxu0 0.0
    %503 = vmatprep.subr.mxu0 0.0
    %504 = vmatpush1.msra.mxu0 0.0
    %505 = vmatprep.subr.mxu0 0.0
    %506 = vmatpush1.msra.mxu0 0.0
    %507 = vmatprep.subr.mxu0 0.0
    %508 = vmatpush1.msra.mxu0 0.0
    %509 = vmatprep.subr.mxu0 0.0
    %510 = vmatpush1.msra.mxu0 0.0
    %511 = vmatprep.subr.mxu0 0.0
    %512 = vmatpush1.msra.mxu0 0.0
    %513 = vmatprep.subr.mxu0 0.0
    %514 = vmatpush1.msra.mxu0 0.0
    %515 = vmatprep.subr.mxu0 0.0
    %516 = vmatpush1.msra.mxu0 0.0
    %517 = vmatprep.subr.mxu0 0.0
    %518 = vmatpush1.msra.mxu0 0.0
    %519 = vmatprep.subr.mxu0 0.0
    %520 = vmatpush1.msra.mxu0 0.0
    %521 = vmatprep.subr.mxu0 0.0
    %522 = vmatpush1.msra.mxu0 0.0
    %523 = vmatprep.subr.mxu0 0.0
    %524 = vmatpush1.msra.mxu0 0.0
    %525 = vmatprep.subr.mxu0 0.0
    %526 = vmatpush1.msra.mxu0 0.0
    %527 = vmatprep.subr.mxu0 0.0
    %528 = vmatpush1.msra.mxu0 0.0
    %529 = vmatprep.subr.mxu0 0.0
    %530 = vmatpush1.msra.mxu0 0.0
    %531 = vmatprep.mubr.f32.mxu0 0.0
    %532 = vmatmul.mubr.f32.gmra.mrb[0].mxu0 %v456
    %v533 = vpop.f32.mrb[0].mxu0
    %v534 = vadd.f32 %v448, %v533
    %v535 = vpop.f32.mrb[0].mxu0
    %v536 = vadd.f32 %v448, %v535
    %537 = vmatprep.mubr.f32.mxu0 0.0
    %538 = vmatmul.mubr.f32.gmra.mrb[0].mxu0 %v459
    %v539 = vpop.f32.mrb[0].mxu0
    %v540 = vadd.f32 %v453, %v539
    %v541 = vpop.f32.mrb[0].mxu0
    %v542 = vadd.f32 %v453, %v541
    %543 = vdwg.mxu0
    %s544 = scalar_lea.vmem %s0, 80
    %v545 = vld [vmem:[%s544] sm:$0xff]
    %v546 = vld [vmem:[%s544 + $0x8] sm:$0x3]
    %s547 = scalar_lea.vmem %s1, 80
    %v548 = vld [vmem:[%s547] sm:$0xff]
    %v549 = vld [vmem:[%s547 + $0x8] sm:$0x3]
    %551 = vset.pattern.permute.xlu0 0
    %552 = vperm.xlu0 %551, %v548
    %v553 = vpop.permute.xlu0 %552
    %556 = vset.pattern.permute.xlu0 0
    %557 = vperm.xlu0 %556, %v549
    %v558 = vpop.permute.xlu0 %557
    %v561 = vsel %vm33, %v545, 0
    %v564 = vsel %vm33, %v546, 0
    %v567 = vsel %vm40, %v540, 0
    %v570 = vsel %vm40, %v542, 0
    %572 = vmatprep.subr.mxu0 %v536
    %573 = vmatpush1.msra.mxu0 %v534
    %574 = vmatprep.subr.mxu0 %v570
    %575 = vmatpush1.msra.mxu0 %v567
    %576 = vmatprep.subr.mxu0 0.0
    %577 = vmatpush1.msra.mxu0 0.0
    %578 = vmatprep.subr.mxu0 0.0
    %579 = vmatpush1.msra.mxu0 0.0
    %580 = vmatprep.subr.mxu0 0.0
    %581 = vmatpush1.msra.mxu0 0.0
    %582 = vmatprep.subr.mxu0 0.0
    %583 = vmatpush1.msra.mxu0 0.0
    %584 = vmatprep.subr.mxu0 0.0
    %585 = vmatpush1.msra.mxu0 0.0
    %586 = vmatprep.subr.mxu0 0.0
    %587 = vmatpush1.msra.mxu0 0.0
    %588 = vmatprep.subr.mxu0 0.0
    %589 = vmatpush1.msra.mxu0 0.0
    %590 = vmatprep.subr.mxu0 0.0
    %591 = vmatpush1.msra.mxu0 0.0
    %592 = vmatprep.subr.mxu0 0.0
    %593 = vmatpush1.msra.mxu0 0.0
    %594 = vmatprep.subr.mxu0 0.0
    %595 = vmatpush1.msra.mxu0 0.0
    %596 = vmatprep.subr.mxu0 0.0
    %597 = vmatpush1.msra.mxu0 0.0
    %598 = vmatprep.subr.mxu0 0.0
    %599 = vmatpush1.msra.mxu0 0.0
    %600 = vmatprep.subr.mxu0 0.0
    %601 = vmatpush1.msra.mxu0 0.0
    %602 = vmatprep.subr.mxu0 0.0
    %603 = vmatpush1.msra.mxu0 0.0
    %604 = vmatprep.subr.mxu0 0.0
    %605 = vmatpush1.msra.mxu0 0.0
    %606 = vmatprep.subr.mxu0 0.0
    %607 = vmatpush1.msra.mxu0 0.0
    %608 = vmatprep.subr.mxu0 0.0
    %609 = vmatpush1.msra.mxu0 0.0
    %610 = vmatprep.subr.mxu0 0.0
    %611 = vmatpush1.msra.mxu0 0.0
    %612 = vmatprep.subr.mxu0 0.0
    %613 = vmatpush1.msra.mxu0 0.0
    %614 = vmatprep.subr.mxu0 0.0
    %615 = vmatpush1.msra.mxu0 0.0
    %616 = vmatprep.subr.mxu0 0.0
    %617 = vmatpush1.msra.mxu0 0.0
    %618 = vmatprep.subr.mxu0 0.0
    %619 = vmatpush1.msra.mxu0 0.0
    %620 = vmatprep.subr.mxu0 0.0
    %621 = vmatpush1.msra.mxu0 0.0
    %622 = vmatprep.subr.mxu0 0.0
    %623 = vmatpush1.msra.mxu0 0.0
    %624 = vmatprep.subr.mxu0 0.0
    %625 = vmatpush1.msra.mxu0 0.0
    %626 = vmatprep.subr.mxu0 0.0
    %627 = vmatpush1.msra.mxu0 0.0
    %628 = vmatprep.subr.mxu0 0.0
    %629 = vmatpush1.msra.mxu0 0.0
    %630 = vmatprep.subr.mxu0 0.0
    %631 = vmatpush1.msra.mxu0 0.0
    %632 = vmatprep.subr.mxu0 0.0
    %633 = vmatpush1.msra.mxu0 0.0
    %634 = vmatprep.subr.mxu0 0.0
    %635 = vmatpush1.msra.mxu0 0.0
    %636 = vmatprep.mubr.f32.mxu0 0.0
    %637 = vmatmul.mubr.f32.gmra.mrb[0].mxu0 %v561
    %v638 = vpop.f32.mrb[0].mxu0
    %v639 = vadd.f32 %v553, %v638
    %v640 = vpop.f32.mrb[0].mxu0
    %v641 = vadd.f32 %v553, %v640
    %642 = vmatprep.mubr.f32.mxu0 0.0
    %643 = vmatmul.mubr.f32.gmra.mrb[0].mxu0 %v564
    %v644 = vpop.f32.mrb[0].mxu0
    %v645 = vadd.f32 %v558, %v644
    %v646 = vpop.f32.mrb[0].mxu0
    %v647 = vadd.f32 %v558, %v646
    %648 = vdwg.mxu0
    %s649 = scalar_lea.vmem %s0, 96
    %v650 = vld [vmem:[%s649] sm:$0xff]
    %v651 = vld [vmem:[%s649 + $0x8] sm:$0x3]
    %s652 = scalar_lea.vmem %s1, 96
    %v653 = vld [vmem:[%s652] sm:$0xff]
    %v654 = vld [vmem:[%s652 + $0x8] sm:$0x3]
    %656 = vset.pattern.permute.xlu0 0
    %657 = vperm.xlu0 %656, %v653
    %v658 = vpop.permute.xlu0 %657
    %661 = vset.pattern.permute.xlu0 0
    %662 = vperm.xlu0 %661, %v654
    %v663 = vpop.permute.xlu0 %662
    %v666 = vsel %vm33, %v650, 0
    %v669 = vsel %vm33, %v651, 0
    %v672 = vsel %vm40, %v645, 0
    %v675 = vsel %vm40, %v647, 0
    %677 = vmatprep.subr.mxu0 %v641
    %678 = vmatpush1.msra.mxu0 %v639
    %679 = vmatprep.subr.mxu0 %v675
    %680 = vmatpush1.msra.mxu0 %v672
    %681 = vmatprep.subr.mxu0 0.0
    %682 = vmatpush1.msra.mxu0 0.0
    %683 = vmatprep.subr.mxu0 0.0
    %684 = vmatpush1.msra.mxu0 0.0
    %685 = vmatprep.subr.mxu0 0.0
    %686 = vmatpush1.msra.mxu0 0.0
    %687 = vmatprep.subr.mxu0 0.0
    %688 = vmatpush1.msra.mxu0 0.0
    %689 = vmatprep.subr.mxu0 0.0
    %690 = vmatpush1.msra.mxu0 0.0
    %691 = vmatprep.subr.mxu0 0.0
    %692 = vmatpush1.msra.mxu0 0.0
    %693 = vmatprep.subr.mxu0 0.0
    %694 = vmatpush1.msra.mxu0 0.0
    %695 = vmatprep.subr.mxu0 0.0
    %696 = vmatpush1.msra.mxu0 0.0
    %697 = vmatprep.subr.mxu0 0.0
    %698 = vmatpush1.msra.mxu0 0.0
    %699 = vmatprep.subr.mxu0 0.0
    %700 = vmatpush1.msra.mxu0 0.0
    %701 = vmatprep.subr.mxu0 0.0
    %702 = vmatpush1.msra.mxu0 0.0
    %703 = vmatprep.subr.mxu0 0.0
    %704 = vmatpush1.msra.mxu0 0.0
    %705 = vmatprep.subr.mxu0 0.0
    %706 = vmatpush1.msra.mxu0 0.0
    %707 = vmatprep.subr.mxu0 0.0
    %708 = vmatpush1.msra.mxu0 0.0
    %709 = vmatprep.subr.mxu0 0.0
    %710 = vmatpush1.msra.mxu0 0.0
    %711 = vmatprep.subr.mxu0 0.0
    %712 = vmatpush1.msra.mxu0 0.0
    %713 = vmatprep.subr.mxu0 0.0
    %714 = vmatpush1.msra.mxu0 0.0
    %715 = vmatprep.subr.mxu0 0.0
    %716 = vmatpush1.msra.mxu0 0.0
    %717 = vmatprep.subr.mxu0 0.0
    %718 = vmatpush1.msra.mxu0 0.0
    %719 = vmatprep.subr.mxu0 0.0
    %720 = vmatpush1.msra.mxu0 0.0
    %721 = vmatprep.subr.mxu0 0.0
    %722 = vmatpush1.msra.mxu0 0.0
    %723 = vmatprep.subr.mxu0 0.0
    %724 = vmatpush1.msra.mxu0 0.0
    %725 = vmatprep.subr.mxu0 0.0
    %726 = vmatpush1.msra.mxu0 0.0
    %727 = vmatprep.subr.mxu0 0.0
    %728 = vmatpush1.msra.mxu0 0.0
    %729 = vmatprep.subr.mxu0 0.0
    %730 = vmatpush1.msra.mxu0 0.0
    %731 = vmatprep.subr.mxu0 0.0
    %732 = vmatpush1.msra.mxu0 0.0
    %733 = vmatprep.subr.mxu0 0.0
    %734 = vmatpush1.msra.mxu0 0.0
    %735 = vmatprep.subr.mxu0 0.0
    %736 = vmatpush1.msra.mxu0 0.0
    %737 = vmatprep.subr.mxu0 0.0
    %738 = vmatpush1.msra.mxu0 0.0
    %739 = vmatprep.subr.mxu0 0.0
    %740 = vmatpush1.msra.mxu0 0.0
    %741 = vmatprep.mubr.f32.mxu0 0.0
    %742 = vmatmul.mubr.f32.gmra.mrb[0].mxu0 %v666
    %v743 = vpop.f32.mrb[0].mxu0
    %v744 = vadd.f32 %v658, %v743
    %v745 = vpop.f32.mrb[0].mxu0
    %v746 = vadd.f32 %v658, %v745
    %747 = vmatprep.mubr.f32.mxu0 0.0
    %748 = vmatmul.mubr.f32.gmra.mrb[0].mxu0 %v669
    %v749 = vpop.f32.mrb[0].mxu0
    %v750 = vadd.f32 %v663, %v749
    %v751 = vpop.f32.mrb[0].mxu0
    %v752 = vadd.f32 %v663, %v751
    %753 = vdwg.mxu0
    %s754 = scalar_lea.vmem %s0, 112
    %v755 = vld [vmem:[%s754] sm:$0xff]
    %v756 = vld [vmem:[%s754 + $0x8] sm:$0x3]
    %s757 = scalar_lea.vmem %s1, 112
    %v758 = vld [vmem:[%s757] sm:$0xff]
    %v759 = vld [vmem:[%s757 + $0x8] sm:$0x3]
    %761 = vset.pattern.permute.xlu0 0
    %762 = vperm.xlu0 %761, %v758
    %v763 = vpop.permute.xlu0 %762
    %766 = vset.pattern.permute.xlu0 0
    %767 = vperm.xlu0 %766, %v759
    %v768 = vpop.permute.xlu0 %767
    %v771 = vsel %vm33, %v755, 0
    %v774 = vsel %vm33, %v756, 0
    %v777 = vsel %vm40, %v750, 0
    %v780 = vsel %vm40, %v752, 0
    %782 = vmatprep.subr.mxu0 %v746
    %783 = vmatpush1.msra.mxu0 %v744
    %784 = vmatprep.subr.mxu0 %v780
    %785 = vmatpush1.msra.mxu0 %v777
    %786 = vmatprep.subr.mxu0 0.0
    %787 = vmatpush1.msra.mxu0 0.0
    %788 = vmatprep.subr.mxu0 0.0
    %789 = vmatpush1.msra.mxu0 0.0
    %790 = vmatprep.subr.mxu0 0.0
    %791 = vmatpush1.msra.mxu0 0.0
    %792 = vmatprep.subr.mxu0 0.0
    %793 = vmatpush1.msra.mxu0 0.0
    %794 = vmatprep.subr.mxu0 0.0
    %795 = vmatpush1.msra.mxu0 0.0
    %796 = vmatprep.subr.mxu0 0.0
    %797 = vmatpush1.msra.mxu0 0.0
    %798 = vmatprep.subr.mxu0 0.0
    %799 = vmatpush1.msra.mxu0 0.0
    %800 = vmatprep.subr.mxu0 0.0
    %801 = vmatpush1.msra.mxu0 0.0
    %802 = vmatprep.subr.mxu0 0.0
    %803 = vmatpush1.msra.mxu0 0.0
    %804 = vmatprep.subr.mxu0 0.0
    %805 = vmatpush1.msra.mxu0 0.0
    %806 = vmatprep.subr.mxu0 0.0
    %807 = vmatpush1.msra.mxu0 0.0
    %808 = vmatprep.subr.mxu0 0.0
    %809 = vmatpush1.msra.mxu0 0.0
    %810 = vmatprep.subr.mxu0 0.0
    %811 = vmatpush1.msra.mxu0 0.0
    %812 = vmatprep.subr.mxu0 0.0
    %813 = vmatpush1.msra.mxu0 0.0
    %814 = vmatprep.subr.mxu0 0.0
    %815 = vmatpush1.msra.mxu0 0.0
    %816 = vmatprep.subr.mxu0 0.0
    %817 = vmatpush1.msra.mxu0 0.0
    %818 = vmatprep.subr.mxu0 0.0
    %819 = vmatpush1.msra.mxu0 0.0
    %820 = vmatprep.subr.mxu0 0.0
    %821 = vmatpush1.msra.mxu0 0.0
    %822 = vmatprep.subr.mxu0 0.0
    %823 = vmatpush1.msra.mxu0 0.0
    %824 = vmatprep.subr.mxu0 0.0
    %825 = vmatpush1.msra.mxu0 0.0
    %826 = vmatprep.subr.mxu0 0.0
    %827 = vmatpush1.msra.mxu0 0.0
    %828 = vmatprep.subr.mxu0 0.0
    %829 = vmatpush1.msra.mxu0 0.0
    %830 = vmatprep.subr.mxu0 0.0
    %831 = vmatpush1.msra.mxu0 0.0
    %832 = vmatprep.subr.mxu0 0.0
    %833 = vmatpush1.msra.mxu0 0.0
    %834 = vmatprep.subr.mxu0 0.0
    %835 = vmatpush1.msra.mxu0 0.0
    %836 = vmatprep.subr.mxu0 0.0
    %837 = vmatpush1.msra.mxu0 0.0
    %838 = vmatprep.subr.mxu0 0.0
    %839 = vmatpush1.msra.mxu0 0.0
    %840 = vmatprep.subr.mxu0 0.0
    %841 = vmatpush1.msra.mxu0 0.0
    %842 = vmatprep.subr.mxu0 0.0
    %843 = vmatpush1.msra.mxu0 0.0
    %844 = vmatprep.subr.mxu0 0.0
    %845 = vmatpush1.msra.mxu0 0.0
    %846 = vmatprep.mubr.f32.mxu0 0.0
    %847 = vmatmul.mubr.f32.gmra.mrb[0].mxu0 %v771
    %v848 = vpop.f32.mrb[0].mxu0
    %v849 = vadd.f32 %v763, %v848
    %v850 = vpop.f32.mrb[0].mxu0
    %v851 = vadd.f32 %v763, %v850
    %852 = vmatprep.mubr.f32.mxu0 0.0
    %853 = vmatmul.mubr.f32.gmra.mrb[0].mxu0 %v774
    %v854 = vpop.f32.mrb[0].mxu0
    %v855 = vadd.f32 %v768, %v854
    %v856 = vpop.f32.mrb[0].mxu0
    %v857 = vadd.f32 %v768, %v856
    %858 = vdwg.mxu0
    %s859 = scalar_lea.vmem %s0, 128
    %v860 = vld [vmem:[%s859] sm:$0xff]
    %v861 = vld [vmem:[%s859 + $0x8] sm:$0x3]
    %s862 = scalar_lea.vmem %s1, 128
    %v863 = vld [vmem:[%s862] sm:$0xff]
    %v864 = vld [vmem:[%s862 + $0x8] sm:$0x3]
    %866 = vset.pattern.permute.xlu0 0
    %867 = vperm.xlu0 %866, %v863
    %v868 = vpop.permute.xlu0 %867
    %871 = vset.pattern.permute.xlu0 0
    %872 = vperm.xlu0 %871, %v864
    %v873 = vpop.permute.xlu0 %872
    %v876 = vsel %vm33, %v860, 0
    %v879 = vsel %vm33, %v861, 0
    %v882 = vsel %vm40, %v855, 0
    %v885 = vsel %vm40, %v857, 0
    %887 = vmatprep.subr.mxu0 %v851
    %888 = vmatpush1.msra.mxu0 %v849
    %889 = vmatprep.subr.mxu0 %v885
    %890 = vmatpush1.msra.mxu0 %v882
    %891 = vmatprep.subr.mxu0 0.0
    %892 = vmatpush1.msra.mxu0 0.0
    %893 = vmatprep.subr.mxu0 0.0
    %894 = vmatpush1.msra.mxu0 0.0
    %895 = vmatprep.subr.mxu0 0.0
    %896 = vmatpush1.msra.mxu0 0.0
    %897 = vmatprep.subr.mxu0 0.0
    %898 = vmatpush1.msra.mxu0 0.0
    %899 = vmatprep.subr.mxu0 0.0
    %900 = vmatpush1.msra.mxu0 0.0
    %901 = vmatprep.subr.mxu0 0.0
    %902 = vmatpush1.msra.mxu0 0.0
    %903 = vmatprep.subr.mxu0 0.0
    %904 = vmatpush1.msra.mxu0 0.0
    %905 = vmatprep.subr.mxu0 0.0
    %906 = vmatpush1.msra.mxu0 0.0
    %907 = vmatprep.subr.mxu0 0.0
    %908 = vmatpush1.msra.mxu0 0.0
    %909 = vmatprep.subr.mxu0 0.0
    %910 = vmatpush1.msra.mxu0 0.0
    %911 = vmatprep.subr.mxu0 0.0
    %912 = vmatpush1.msra.mxu0 0.0
    %913 = vmatprep.subr.mxu0 0.0
    %914 = vmatpush1.msra.mxu0 0.0
    %915 = vmatprep.subr.mxu0 0.0
    %916 = vmatpush1.msra.mxu0 0.0
    %917 = vmatprep.subr.mxu0 0.0
    %918 = vmatpush1.msra.mxu0 0.0
    %919 = vmatprep.subr.mxu0 0.0
    %920 = vmatpush1.msra.mxu0 0.0
    %921 = vmatprep.subr.mxu0 0.0
    %922 = vmatpush1.msra.mxu0 0.0
    %923 = vmatprep.subr.mxu0 0.0
    %924 = vmatpush1.msra.mxu0 0.0
    %925 = vmatprep.subr.mxu0 0.0
    %926 = vmatpush1.msra.mxu0 0.0
    %927 = vmatprep.subr.mxu0 0.0
    %928 = vmatpush1.msra.mxu0 0.0
    %929 = vmatprep.subr.mxu0 0.0
    %930 = vmatpush1.msra.mxu0 0.0
    %931 = vmatprep.subr.mxu0 0.0
    %932 = vmatpush1.msra.mxu0 0.0
    %933 = vmatprep.subr.mxu0 0.0
    %934 = vmatpush1.msra.mxu0 0.0
    %935 = vmatprep.subr.mxu0 0.0
    %936 = vmatpush1.msra.mxu0 0.0
    %937 = vmatprep.subr.mxu0 0.0
    %938 = vmatpush1.msra.mxu0 0.0
    %939 = vmatprep.subr.mxu0 0.0
    %940 = vmatpush1.msra.mxu0 0.0
    %941 = vmatprep.subr.mxu0 0.0
    %942 = vmatpush1.msra.mxu0 0.0
    %943 = vmatprep.subr.mxu0 0.0
    %944 = vmatpush1.msra.mxu0 0.0
    %945 = vmatprep.subr.mxu0 0.0
    %946 = vmatpush1.msra.mxu0 0.0
    %947 = vmatprep.subr.mxu0 0.0
    %948 = vmatpush1.msra.mxu0 0.0
    %949 = vmatprep.subr.mxu0 0.0
    %950 = vmatpush1.msra.mxu0 0.0
    %951 = vmatprep.mubr.f32.mxu0 0.0
    %952 = vmatmul.mubr.f32.gmra.mrb[0].mxu0 %v876
    %v953 = vpop.f32.mrb[0].mxu0
    %v954 = vadd.f32 %v868, %v953
    %v955 = vpop.f32.mrb[0].mxu0
    %v956 = vadd.f32 %v868, %v955
    %957 = vmatprep.mubr.f32.mxu0 0.0
    %958 = vmatmul.mubr.f32.gmra.mrb[0].mxu0 %v879
    %v959 = vpop.f32.mrb[0].mxu0
    %v960 = vadd.f32 %v873, %v959
    %v961 = vpop.f32.mrb[0].mxu0
    %v962 = vadd.f32 %v873, %v961
    %963 = vdwg.mxu0
    %s964 = scalar_lea.vmem %s0, 144
    %v965 = vld [vmem:[%s964] sm:$0xff]
    %v966 = vld [vmem:[%s964 + $0x8] sm:$0x3]
    %s967 = scalar_lea.vmem %s1, 144
    %v968 = vld [vmem:[%s967] sm:$0xff]
    %v969 = vld [vmem:[%s967 + $0x8] sm:$0x3]
    %971 = vset.pattern.permute.xlu0 0
    %972 = vperm.xlu0 %971, %v968
    %v973 = vpop.permute.xlu0 %972
    %976 = vset.pattern.permute.xlu0 0
    %977 = vperm.xlu0 %976, %v969
    %v978 = vpop.permute.xlu0 %977
    %v981 = vsel %vm33, %v965, 0
    %v984 = vsel %vm33, %v966, 0
    %v987 = vsel %vm40, %v960, 0
    %v990 = vsel %vm40, %v962, 0
    %992 = vmatprep.subr.mxu0 %v956
    %993 = vmatpush1.msra.mxu0 %v954
    %994 = vmatprep.subr.mxu0 %v990
    %995 = vmatpush1.msra.mxu0 %v987
    %996 = vmatprep.subr.mxu0 0.0
    %997 = vmatpush1.msra.mxu0 0.0
    %998 = vmatprep.subr.mxu0 0.0
    %999 = vmatpush1.msra.mxu0 0.0
    %1000 = vmatprep.subr.mxu0 0.0
    %1001 = vmatpush1.msra.mxu0 0.0
    %1002 = vmatprep.subr.mxu0 0.0
    %1003 = vmatpush1.msra.mxu0 0.0
    %1004 = vmatprep.subr.mxu0 0.0
    %1005 = vmatpush1.msra.mxu0 0.0
    %1006 = vmatprep.subr.mxu0 0.0
    %1007 = vmatpush1.msra.mxu0 0.0
    %1008 = vmatprep.subr.mxu0 0.0
    %1009 = vmatpush1.msra.mxu0 0.0
    %1010 = vmatprep.subr.mxu0 0.0
    %1011 = vmatpush1.msra.mxu0 0.0
    %1012 = vmatprep.subr.mxu0 0.0
    %1013 = vmatpush1.msra.mxu0 0.0
    %1014 = vmatprep.subr.mxu0 0.0
    %1015 = vmatpush1.msra.mxu0 0.0
    %1016 = vmatprep.subr.mxu0 0.0
    %1017 = vmatpush1.msra.mxu0 0.0
    %1018 = vmatprep.subr.mxu0 0.0
    %1019 = vmatpush1.msra.mxu0 0.0
    %1020 = vmatprep.subr.mxu0 0.0
    %1021 = vmatpush1.msra.mxu0 0.0
    %1022 = vmatprep.subr.mxu0 0.0
    %1023 = vmatpush1.msra.mxu0 0.0
    %1024 = vmatprep.subr.mxu0 0.0
    %1025 = vmatpush1.msra.mxu0 0.0
    %1026 = vmatprep.subr.mxu0 0.0
    %1027 = vmatpush1.msra.mxu0 0.0
    %1028 = vmatprep.subr.mxu0 0.0
    %1029 = vmatpush1.msra.mxu0 0.0
    %1030 = vmatprep.subr.mxu0 0.0
    %1031 = vmatpush1.msra.mxu0 0.0
    %1032 = vmatprep.subr.mxu0 0.0
    %1033 = vmatpush1.msra.mxu0 0.0
    %1034 = vmatprep.subr.mxu0 0.0
    %1035 = vmatpush1.msra.mxu0 0.0
    %1036 = vmatprep.subr.mxu0 0.0
    %1037 = vmatpush1.msra.mxu0 0.0
    %1038 = vmatprep.subr.mxu0 0.0
    %1039 = vmatpush1.msra.mxu0 0.0
    %1040 = vmatprep.subr.mxu0 0.0
    %1041 = vmatpush1.msra.mxu0 0.0
    %1042 = vmatprep.subr.mxu0 0.0
    %1043 = vmatpush1.msra.mxu0 0.0
    %1044 = vmatprep.subr.mxu0 0.0
    %1045 = vmatpush1.msra.mxu0 0.0
    %1046 = vmatprep.subr.mxu0 0.0
    %1047 = vmatpush1.msra.mxu0 0.0
    %1048 = vmatprep.subr.mxu0 0.0
    %1049 = vmatpush1.msra.mxu0 0.0
    %1050 = vmatprep.subr.mxu0 0.0
    %1051 = vmatpush1.msra.mxu0 0.0
    %1052 = vmatprep.subr.mxu0 0.0
    %1053 = vmatpush1.msra.mxu0 0.0
    %1054 = vmatprep.subr.mxu0 0.0
    %1055 = vmatpush1.msra.mxu0 0.0
    %1056 = vmatprep.mubr.f32.mxu0 0.0
    %1057 = vmatmul.mubr.f32.gmra.mrb[0].mxu0 %v981
    %v1058 = vpop.f32.mrb[0].mxu0
    %v1059 = vadd.f32 %v973, %v1058
    %v1060 = vpop.f32.mrb[0].mxu0
    %v1061 = vadd.f32 %v973, %v1060
    %1062 = vmatprep.mubr.f32.mxu0 0.0
    %1063 = vmatmul.mubr.f32.gmra.mrb[0].mxu0 %v984
    %v1064 = vpop.f32.mrb[0].mxu0
    %v1065 = vadd.f32 %v978, %v1064
    %v1066 = vpop.f32.mrb[0].mxu0
    %v1067 = vadd.f32 %v978, %v1066
    %1068 = vdwg.mxu0
    %s1069 = scalar_lea.vmem %s0, 160
    %v1070 = vld [vmem:[%s1069] sm:$0xff]
    %v1071 = vld [vmem:[%s1069 + $0x8] sm:$0x3]
    %s1072 = scalar_lea.vmem %s1, 160
    %v1073 = vld [vmem:[%s1072] sm:$0xff]
    %v1074 = vld [vmem:[%s1072 + $0x8] sm:$0x3]
    %1076 = vset.pattern.permute.xlu0 0
    %1077 = vperm.xlu0 %1076, %v1073
    %v1078 = vpop.permute.xlu0 %1077
    %1081 = vset.pattern.permute.xlu0 0
    %1082 = vperm.xlu0 %1081, %v1074
    %v1083 = vpop.permute.xlu0 %1082
    %v1086 = vsel %vm33, %v1070, 0
    %v1089 = vsel %vm33, %v1071, 0
    %v1092 = vsel %vm40, %v1065, 0
    %v1095 = vsel %vm40, %v1067, 0
    %1097 = vmatprep.subr.mxu0 %v1061
    %1098 = vmatpush1.msra.mxu0 %v1059
    %1099 = vmatprep.subr.mxu0 %v1095
    %1100 = vmatpush1.msra.mxu0 %v1092
    %1101 = vmatprep.subr.mxu0 0.0
    %1102 = vmatpush1.msra.mxu0 0.0
    %1103 = vmatprep.subr.mxu0 0.0
    %1104 = vmatpush1.msra.mxu0 0.0
    %1105 = vmatprep.subr.mxu0 0.0
    %1106 = vmatpush1.msra.mxu0 0.0
    %1107 = vmatprep.subr.mxu0 0.0
    %1108 = vmatpush1.msra.mxu0 0.0
    %1109 = vmatprep.subr.mxu0 0.0
    %1110 = vmatpush1.msra.mxu0 0.0
    %1111 = vmatprep.subr.mxu0 0.0
    %1112 = vmatpush1.msra.mxu0 0.0
    %1113 = vmatprep.subr.mxu0 0.0
    %1114 = vmatpush1.msra.mxu0 0.0
    %1115 = vmatprep.subr.mxu0 0.0
    %1116 = vmatpush1.msra.mxu0 0.0
    %1117 = vmatprep.subr.mxu0 0.0
    %1118 = vmatpush1.msra.mxu0 0.0
    %1119 = vmatprep.subr.mxu0 0.0
    %1120 = vmatpush1.msra.mxu0 0.0
    %1121 = vmatprep.subr.mxu0 0.0
    %1122 = vmatpush1.msra.mxu0 0.0
    %1123 = vmatprep.subr.mxu0 0.0
    %1124 = vmatpush1.msra.mxu0 0.0
    %1125 = vmatprep.subr.mxu0 0.0
    %1126 = vmatpush1.msra.mxu0 0.0
    %1127 = vmatprep.subr.mxu0 0.0
    %1128 = vmatpush1.msra.mxu0 0.0
    %1129 = vmatprep.subr.mxu0 0.0
    %1130 = vmatpush1.msra.mxu0 0.0
    %1131 = vmatprep.subr.mxu0 0.0
    %1132 = vmatpush1.msra.mxu0 0.0
    %1133 = vmatprep.subr.mxu0 0.0
    %1134 = vmatpush1.msra.mxu0 0.0
    %1135 = vmatprep.subr.mxu0 0.0
    %1136 = vmatpush1.msra.mxu0 0.0
    %1137 = vmatprep.subr.mxu0 0.0
    %1138 = vmatpush1.msra.mxu0 0.0
    %1139 = vmatprep.subr.mxu0 0.0
    %1140 = vmatpush1.msra.mxu0 0.0
    %1141 = vmatprep.subr.mxu0 0.0
    %1142 = vmatpush1.msra.mxu0 0.0
    %1143 = vmatprep.subr.mxu0 0.0
    %1144 = vmatpush1.msra.mxu0 0.0
    %1145 = vmatprep.subr.mxu0 0.0
    %1146 = vmatpush1.msra.mxu0 0.0
    %1147 = vmatprep.subr.mxu0 0.0
    %1148 = vmatpush1.msra.mxu0 0.0
    %1149 = vmatprep.subr.mxu0 0.0
    %1150 = vmatpush1.msra.mxu0 0.0
    %1151 = vmatprep.subr.mxu0 0.0
    %1152 = vmatpush1.msra.mxu0 0.0
    %1153 = vmatprep.subr.mxu0 0.0
    %1154 = vmatpush1.msra.mxu0 0.0
    %1155 = vmatprep.subr.mxu0 0.0
    %1156 = vmatpush1.msra.mxu0 0.0
    %1157 = vmatprep.subr.mxu0 0.0
    %1158 = vmatpush1.msra.mxu0 0.0
    %1159 = vmatprep.subr.mxu0 0.0
    %1160 = vmatpush1.msra.mxu0 0.0
    %1161 = vmatprep.mubr.f32.mxu0 0.0
    %1162 = vmatmul.mubr.f32.gmra.mrb[0].mxu0 %v1086
    %v1163 = vpop.f32.mrb[0].mxu0
    %v1164 = vadd.f32 %v1078, %v1163
    %v1165 = vpop.f32.mrb[0].mxu0
    %v1166 = vadd.f32 %v1078, %v1165
    %1167 = vmatprep.mubr.f32.mxu0 0.0
    %1168 = vmatmul.mubr.f32.gmra.mrb[0].mxu0 %v1089
    %v1169 = vpop.f32.mrb[0].mxu0
    %v1170 = vadd.f32 %v1083, %v1169
    %v1171 = vpop.f32.mrb[0].mxu0
    %v1172 = vadd.f32 %v1083, %v1171
    %1173 = vdwg.mxu0
    %s1174 = scalar_lea.vmem %s0, 176
    %v1175 = vld [vmem:[%s1174] sm:$0xff]
    %v1176 = vld [vmem:[%s1174 + $0x8] sm:$0x3]
    %s1177 = scalar_lea.vmem %s1, 176
    %v1178 = vld [vmem:[%s1177] sm:$0xff]
    %v1179 = vld [vmem:[%s1177 + $0x8] sm:$0x3]
    %1181 = vset.pattern.permute.xlu0 0
    %1182 = vperm.xlu0 %1181, %v1178
    %v1183 = vpop.permute.xlu0 %1182
    %1186 = vset.pattern.permute.xlu0 0
    %1187 = vperm.xlu0 %1186, %v1179
    %v1188 = vpop.permute.xlu0 %1187
    %v1191 = vsel %vm33, %v1175, 0
    %v1194 = vsel %vm33, %v1176, 0
    %v1197 = vsel %vm40, %v1170, 0
    %v1200 = vsel %vm40, %v1172, 0
    %1202 = vmatprep.subr.mxu0 %v1166
    %1203 = vmatpush1.msra.mxu0 %v1164
    %1204 = vmatprep.subr.mxu0 %v1200
    %1205 = vmatpush1.msra.mxu0 %v1197
    %1206 = vmatprep.subr.mxu0 0.0
    %1207 = vmatpush1.msra.mxu0 0.0
    %1208 = vmatprep.subr.mxu0 0.0
    %1209 = vmatpush1.msra.mxu0 0.0
    %1210 = vmatprep.subr.mxu0 0.0
    %1211 = vmatpush1.msra.mxu0 0.0
    %1212 = vmatprep.subr.mxu0 0.0
    %1213 = vmatpush1.msra.mxu0 0.0
    %1214 = vmatprep.subr.mxu0 0.0
    %1215 = vmatpush1.msra.mxu0 0.0
    %1216 = vmatprep.subr.mxu0 0.0
    %1217 = vmatpush1.msra.mxu0 0.0
    %1218 = vmatprep.subr.mxu0 0.0
    %1219 = vmatpush1.msra.mxu0 0.0
    %1220 = vmatprep.subr.mxu0 0.0
    %1221 = vmatpush1.msra.mxu0 0.0
    %1222 = vmatprep.subr.mxu0 0.0
    %1223 = vmatpush1.msra.mxu0 0.0
    %1224 = vmatprep.subr.mxu0 0.0
    %1225 = vmatpush1.msra.mxu0 0.0
    %1226 = vmatprep.subr.mxu0 0.0
    %1227 = vmatpush1.msra.mxu0 0.0
    %1228 = vmatprep.subr.mxu0 0.0
    %1229 = vmatpush1.msra.mxu0 0.0
    %1230 = vmatprep.subr.mxu0 0.0
    %1231 = vmatpush1.msra.mxu0 0.0
    %1232 = vmatprep.subr.mxu0 0.0
    %1233 = vmatpush1.msra.mxu0 0.0
    %1234 = vmatprep.subr.mxu0 0.0
    %1235 = vmatpush1.msra.mxu0 0.0
    %1236 = vmatprep.subr.mxu0 0.0
    %1237 = vmatpush1.msra.mxu0 0.0
    %1238 = vmatprep.subr.mxu0 0.0
    %1239 = vmatpush1.msra.mxu0 0.0
    %1240 = vmatprep.subr.mxu0 0.0
    %1241 = vmatpush1.msra.mxu0 0.0
    %1242 = vmatprep.subr.mxu0 0.0
    %1243 = vmatpush1.msra.mxu0 0.0
    %1244 = vmatprep.subr.mxu0 0.0
    %1245 = vmatpush1.msra.mxu0 0.0
    %1246 = vmatprep.subr.mxu0 0.0
    %1247 = vmatpush1.msra.mxu0 0.0
    %1248 = vmatprep.subr.mxu0 0.0
    %1249 = vmatpush1.msra.mxu0 0.0
    %1250 = vmatprep.subr.mxu0 0.0
    %1251 = vmatpush1.msra.mxu0 0.0
    %1252 = vmatprep.subr.mxu0 0.0
    %1253 = vmatpush1.msra.mxu0 0.0
    %1254 = vmatprep.subr.mxu0 0.0
    %1255 = vmatpush1.msra.mxu0 0.0
    %1256 = vmatprep.subr.mxu0 0.0
    %1257 = vmatpush1.msra.mxu0 0.0
    %1258 = vmatprep.subr.mxu0 0.0
    %1259 = vmatpush1.msra.mxu0 0.0
    %1260 = vmatprep.subr.mxu0 0.0
    %1261 = vmatpush1.msra.mxu0 0.0
    %1262 = vmatprep.subr.mxu0 0.0
    %1263 = vmatpush1.msra.mxu0 0.0
    %1264 = vmatprep.subr.mxu0 0.0
    %1265 = vmatpush1.msra.mxu0 0.0
    %1266 = vmatprep.mubr.f32.mxu0 0.0
    %1267 = vmatmul.mubr.f32.gmra.mrb[0].mxu0 %v1191
    %v1268 = vpop.f32.mrb[0].mxu0
    %v1269 = vadd.f32 %v1183, %v1268
    %v1270 = vpop.f32.mrb[0].mxu0
    %v1271 = vadd.f32 %v1183, %v1270
    %1272 = vmatprep.mubr.f32.mxu0 0.0
    %1273 = vmatmul.mubr.f32.gmra.mrb[0].mxu0 %v1194
    %v1274 = vpop.f32.mrb[0].mxu0
    %v1275 = vadd.f32 %v1188, %v1274
    %v1276 = vpop.f32.mrb[0].mxu0
    %v1277 = vadd.f32 %v1188, %v1276
    %1278 = vdwg.mxu0
    %s1279 = scalar_lea.vmem %s0, 192
    %v1280 = vld [vmem:[%s1279] sm:$0xff]
    %v1281 = vld [vmem:[%s1279 + $0x8] sm:$0x3]
    %s1282 = scalar_lea.vmem %s1, 192
    %v1283 = vld [vmem:[%s1282] sm:$0xff]
    %v1284 = vld [vmem:[%s1282 + $0x8] sm:$0x3]
    %1286 = vset.pattern.permute.xlu0 0
    %1287 = vperm.xlu0 %1286, %v1283
    %v1288 = vpop.permute.xlu0 %1287
    %1291 = vset.pattern.permute.xlu0 0
    %1292 = vperm.xlu0 %1291, %v1284
    %v1293 = vpop.permute.xlu0 %1292
    %v1296 = vsel %vm33, %v1280, 0
    %v1299 = vsel %vm33, %v1281, 0
    %v1302 = vsel %vm40, %v1275, 0
    %v1305 = vsel %vm40, %v1277, 0
    %1307 = vmatprep.subr.mxu0 %v1271
    %1308 = vmatpush1.msra.mxu0 %v1269
    %1309 = vmatprep.subr.mxu0 %v1305
    %1310 = vmatpush1.msra.mxu0 %v1302
    %1311 = vmatprep.subr.mxu0 0.0
    %1312 = vmatpush1.msra.mxu0 0.0
    %1313 = vmatprep.subr.mxu0 0.0
    %1314 = vmatpush1.msra.mxu0 0.0
    %1315 = vmatprep.subr.mxu0 0.0
    %1316 = vmatpush1.msra.mxu0 0.0
    %1317 = vmatprep.subr.mxu0 0.0
    %1318 = vmatpush1.msra.mxu0 0.0
    %1319 = vmatprep.subr.mxu0 0.0
    %1320 = vmatpush1.msra.mxu0 0.0
    %1321 = vmatprep.subr.mxu0 0.0
    %1322 = vmatpush1.msra.mxu0 0.0
    %1323 = vmatprep.subr.mxu0 0.0
    %1324 = vmatpush1.msra.mxu0 0.0
    %1325 = vmatprep.subr.mxu0 0.0
    %1326 = vmatpush1.msra.mxu0 0.0
    %1327 = vmatprep.subr.mxu0 0.0
    %1328 = vmatpush1.msra.mxu0 0.0
    %1329 = vmatprep.subr.mxu0 0.0
    %1330 = vmatpush1.msra.mxu0 0.0
    %1331 = vmatprep.subr.mxu0 0.0
    %1332 = vmatpush1.msra.mxu0 0.0
    %1333 = vmatprep.subr.mxu0 0.0
    %1334 = vmatpush1.msra.mxu0 0.0
    %1335 = vmatprep.subr.mxu0 0.0
    %1336 = vmatpush1.msra.mxu0 0.0
    %1337 = vmatprep.subr.mxu0 0.0
    %1338 = vmatpush1.msra.mxu0 0.0
    %1339 = vmatprep.subr.mxu0 0.0
    %1340 = vmatpush1.msra.mxu0 0.0
    %1341 = vmatprep.subr.mxu0 0.0
    %1342 = vmatpush1.msra.mxu0 0.0
    %1343 = vmatprep.subr.mxu0 0.0
    %1344 = vmatpush1.msra.mxu0 0.0
    %1345 = vmatprep.subr.mxu0 0.0
    %1346 = vmatpush1.msra.mxu0 0.0
    %1347 = vmatprep.subr.mxu0 0.0
    %1348 = vmatpush1.msra.mxu0 0.0
    %1349 = vmatprep.subr.mxu0 0.0
    %1350 = vmatpush1.msra.mxu0 0.0
    %1351 = vmatprep.subr.mxu0 0.0
    %1352 = vmatpush1.msra.mxu0 0.0
    %1353 = vmatprep.subr.mxu0 0.0
    %1354 = vmatpush1.msra.mxu0 0.0
    %1355 = vmatprep.subr.mxu0 0.0
    %1356 = vmatpush1.msra.mxu0 0.0
    %1357 = vmatprep.subr.mxu0 0.0
    %1358 = vmatpush1.msra.mxu0 0.0
    %1359 = vmatprep.subr.mxu0 0.0
    %1360 = vmatpush1.msra.mxu0 0.0
    %1361 = vmatprep.subr.mxu0 0.0
    %1362 = vmatpush1.msra.mxu0 0.0
    %1363 = vmatprep.subr.mxu0 0.0
    %1364 = vmatpush1.msra.mxu0 0.0
    %1365 = vmatprep.subr.mxu0 0.0
    %1366 = vmatpush1.msra.mxu0 0.0
    %1367 = vmatprep.subr.mxu0 0.0
    %1368 = vmatpush1.msra.mxu0 0.0
    %1369 = vmatprep.subr.mxu0 0.0
    %1370 = vmatpush1.msra.mxu0 0.0
    %1371 = vmatprep.mubr.f32.mxu0 0.0
    %1372 = vmatmul.mubr.f32.gmra.mrb[0].mxu0 %v1296
    %v1373 = vpop.f32.mrb[0].mxu0
    %v1374 = vadd.f32 %v1288, %v1373
    %v1375 = vpop.f32.mrb[0].mxu0
    %v1376 = vadd.f32 %v1288, %v1375
    %1377 = vmatprep.mubr.f32.mxu0 0.0
    %1378 = vmatmul.mubr.f32.gmra.mrb[0].mxu0 %v1299
    %v1379 = vpop.f32.mrb[0].mxu0
    %v1380 = vadd.f32 %v1293, %v1379
    %v1381 = vpop.f32.mrb[0].mxu0
    %v1382 = vadd.f32 %v1293, %v1381
    %1383 = vdwg.mxu0
    %s1384 = scalar_lea.vmem %s0, 208
    %v1385 = vld [vmem:[%s1384] sm:$0xff]
    %v1386 = vld [vmem:[%s1384 + $0x8] sm:$0x3]
    %s1387 = scalar_lea.vmem %s1, 208
    %v1388 = vld [vmem:[%s1387] sm:$0xff]
    %v1389 = vld [vmem:[%s1387 + $0x8] sm:$0x3]
    %1391 = vset.pattern.permute.xlu0 0
    %1392 = vperm.xlu0 %1391, %v1388
    %v1393 = vpop.permute.xlu0 %1392
    %1396 = vset.pattern.permute.xlu0 0
    %1397 = vperm.xlu0 %1396, %v1389
    %v1398 = vpop.permute.xlu0 %1397
    %v1401 = vsel %vm33, %v1385, 0
    %v1404 = vsel %vm33, %v1386, 0
    %v1407 = vsel %vm40, %v1380, 0
    %v1410 = vsel %vm40, %v1382, 0
    %1412 = vmatprep.subr.mxu0 %v1376
    %1413 = vmatpush1.msra.mxu0 %v1374
    %1414 = vmatprep.subr.mxu0 %v1410
    %1415 = vmatpush1.msra.mxu0 %v1407
    %1416 = vmatprep.subr.mxu0 0.0
    %1417 = vmatpush1.msra.mxu0 0.0
    %1418 = vmatprep.subr.mxu0 0.0
    %1419 = vmatpush1.msra.mxu0 0.0
    %1420 = vmatprep.subr.mxu0 0.0
    %1421 = vmatpush1.msra.mxu0 0.0
    %1422 = vmatprep.subr.mxu0 0.0
    %1423 = vmatpush1.msra.mxu0 0.0
    %1424 = vmatprep.subr.mxu0 0.0
    %1425 = vmatpush1.msra.mxu0 0.0
    %1426 = vmatprep.subr.mxu0 0.0
    %1427 = vmatpush1.msra.mxu0 0.0
    %1428 = vmatprep.subr.mxu0 0.0
    %1429 = vmatpush1.msra.mxu0 0.0
    %1430 = vmatprep.subr.mxu0 0.0
    %1431 = vmatpush1.msra.mxu0 0.0
    %1432 = vmatprep.subr.mxu0 0.0
    %1433 = vmatpush1.msra.mxu0 0.0
    %1434 = vmatprep.subr.mxu0 0.0
    %1435 = vmatpush1.msra.mxu0 0.0
    %1436 = vmatprep.subr.mxu0 0.0
    %1437 = vmatpush1.msra.mxu0 0.0
    %1438 = vmatprep.subr.mxu0 0.0
    %1439 = vmatpush1.msra.mxu0 0.0
    %1440 = vmatprep.subr.mxu0 0.0
    %1441 = vmatpush1.msra.mxu0 0.0
    %1442 = vmatprep.subr.mxu0 0.0
    %1443 = vmatpush1.msra.mxu0 0.0
    %1444 = vmatprep.subr.mxu0 0.0
    %1445 = vmatpush1.msra.mxu0 0.0
    %1446 = vmatprep.subr.mxu0 0.0
    %1447 = vmatpush1.msra.mxu0 0.0
    %1448 = vmatprep.subr.mxu0 0.0
    %1449 = vmatpush1.msra.mxu0 0.0
    %1450 = vmatprep.subr.mxu0 0.0
    %1451 = vmatpush1.msra.mxu0 0.0
    %1452 = vmatprep.subr.mxu0 0.0
    %1453 = vmatpush1.msra.mxu0 0.0
    %1454 = vmatprep.subr.mxu0 0.0
    %1455 = vmatpush1.msra.mxu0 0.0
    %1456 = vmatprep.subr.mxu0 0.0
    %1457 = vmatpush1.msra.mxu0 0.0
    %1458 = vmatprep.subr.mxu0 0.0
    %1459 = vmatpush1.msra.mxu0 0.0
    %1460 = vmatprep.subr.mxu0 0.0
    %1461 = vmatpush1.msra.mxu0 0.0
    %1462 = vmatprep.subr.mxu0 0.0
    %1463 = vmatpush1.msra.mxu0 0.0
    %1464 = vmatprep.subr.mxu0 0.0
    %1465 = vmatpush1.msra.mxu0 0.0
    %1466 = vmatprep.subr.mxu0 0.0
    %1467 = vmatpush1.msra.mxu0 0.0
    %1468 = vmatprep.subr.mxu0 0.0
    %1469 = vmatpush1.msra.mxu0 0.0
    %1470 = vmatprep.subr.mxu0 0.0
    %1471 = vmatpush1.msra.mxu0 0.0
    %1472 = vmatprep.subr.mxu0 0.0
    %1473 = vmatpush1.msra.mxu0 0.0
    %1474 = vmatprep.subr.mxu0 0.0
    %1475 = vmatpush1.msra.mxu0 0.0
    %1476 = vmatprep.mubr.f32.mxu0 0.0
    %1477 = vmatmul.mubr.f32.gmra.mrb[0].mxu0 %v1401
    %v1478 = vpop.f32.mrb[0].mxu0
    %v1479 = vadd.f32 %v1393, %v1478
    %v1480 = vpop.f32.mrb[0].mxu0
    %v1481 = vadd.f32 %v1393, %v1480
    %1482 = vmatprep.mubr.f32.mxu0 0.0
    %1483 = vmatmul.mubr.f32.gmra.mrb[0].mxu0 %v1404
    %v1484 = vpop.f32.mrb[0].mxu0
    %v1485 = vadd.f32 %v1398, %v1484
    %v1486 = vpop.f32.mrb[0].mxu0
    %v1487 = vadd.f32 %v1398, %v1486
    %1488 = vdwg.mxu0
    %s1489 = scalar_lea.vmem %s0, 224
    %v1490 = vld [vmem:[%s1489] sm:$0xff]
    %v1491 = vld [vmem:[%s1489 + $0x8] sm:$0x3]
    %s1492 = scalar_lea.vmem %s1, 224
    %v1493 = vld [vmem:[%s1492] sm:$0xff]
    %v1494 = vld [vmem:[%s1492 + $0x8] sm:$0x3]
    %1496 = vset.pattern.permute.xlu0 0
    %1497 = vperm.xlu0 %1496, %v1493
    %v1498 = vpop.permute.xlu0 %1497
    %1501 = vset.pattern.permute.xlu0 0
    %1502 = vperm.xlu0 %1501, %v1494
    %v1503 = vpop.permute.xlu0 %1502
    %v1506 = vsel %vm33, %v1490, 0
    %v1509 = vsel %vm33, %v1491, 0
    %v1512 = vsel %vm40, %v1485, 0
    %v1515 = vsel %vm40, %v1487, 0
    %1517 = vmatprep.subr.mxu0 %v1481
    %1518 = vmatpush1.msra.mxu0 %v1479
    %1519 = vmatprep.subr.mxu0 %v1515
    %1520 = vmatpush1.msra.mxu0 %v1512
    %1521 = vmatprep.subr.mxu0 0.0
    %1522 = vmatpush1.msra.mxu0 0.0
    %1523 = vmatprep.subr.mxu0 0.0
    %1524 = vmatpush1.msra.mxu0 0.0
    %1525 = vmatprep.subr.mxu0 0.0
    %1526 = vmatpush1.msra.mxu0 0.0
    %1527 = vmatprep.subr.mxu0 0.0
    %1528 = vmatpush1.msra.mxu0 0.0
    %1529 = vmatprep.subr.mxu0 0.0
    %1530 = vmatpush1.msra.mxu0 0.0
    %1531 = vmatprep.subr.mxu0 0.0
    %1532 = vmatpush1.msra.mxu0 0.0
    %1533 = vmatprep.subr.mxu0 0.0
    %1534 = vmatpush1.msra.mxu0 0.0
    %1535 = vmatprep.subr.mxu0 0.0
    %1536 = vmatpush1.msra.mxu0 0.0
    %1537 = vmatprep.subr.mxu0 0.0
    %1538 = vmatpush1.msra.mxu0 0.0
    %1539 = vmatprep.subr.mxu0 0.0
    %1540 = vmatpush1.msra.mxu0 0.0
    %1541 = vmatprep.subr.mxu0 0.0
    %1542 = vmatpush1.msra.mxu0 0.0
    %1543 = vmatprep.subr.mxu0 0.0
    %1544 = vmatpush1.msra.mxu0 0.0
    %1545 = vmatprep.subr.mxu0 0.0
    %1546 = vmatpush1.msra.mxu0 0.0
    %1547 = vmatprep.subr.mxu0 0.0
    %1548 = vmatpush1.msra.mxu0 0.0
    %1549 = vmatprep.subr.mxu0 0.0
    %1550 = vmatpush1.msra.mxu0 0.0
    %1551 = vmatprep.subr.mxu0 0.0
    %1552 = vmatpush1.msra.mxu0 0.0
    %1553 = vmatprep.subr.mxu0 0.0
    %1554 = vmatpush1.msra.mxu0 0.0
    %1555 = vmatprep.subr.mxu0 0.0
    %1556 = vmatpush1.msra.mxu0 0.0
    %1557 = vmatprep.subr.mxu0 0.0
    %1558 = vmatpush1.msra.mxu0 0.0
    %1559 = vmatprep.subr.mxu0 0.0
    %1560 = vmatpush1.msra.mxu0 0.0
    %1561 = vmatprep.subr.mxu0 0.0
    %1562 = vmatpush1.msra.mxu0 0.0
    %1563 = vmatprep.subr.mxu0 0.0
    %1564 = vmatpush1.msra.mxu0 0.0
    %1565 = vmatprep.subr.mxu0 0.0
    %1566 = vmatpush1.msra.mxu0 0.0
    %1567 = vmatprep.subr.mxu0 0.0
    %1568 = vmatpush1.msra.mxu0 0.0
    %1569 = vmatprep.subr.mxu0 0.0
    %1570 = vmatpush1.msra.mxu0 0.0
    %1571 = vmatprep.subr.mxu0 0.0
    %1572 = vmatpush1.msra.mxu0 0.0
    %1573 = vmatprep.subr.mxu0 0.0
    %1574 = vmatpush1.msra.mxu0 0.0
    %1575 = vmatprep.subr.mxu0 0.0
    %1576 = vmatpush1.msra.mxu0 0.0
    %1577 = vmatprep.subr.mxu0 0.0
    %1578 = vmatpush1.msra.mxu0 0.0
    %1579 = vmatprep.subr.mxu0 0.0
    %1580 = vmatpush1.msra.mxu0 0.0
    %1581 = vmatprep.mubr.f32.mxu0 0.0
    %1582 = vmatmul.mubr.f32.gmra.mrb[0].mxu0 %v1506
    %v1583 = vpop.f32.mrb[0].mxu0
    %v1584 = vadd.f32 %v1498, %v1583
    %v1585 = vpop.f32.mrb[0].mxu0
    %v1586 = vadd.f32 %v1498, %v1585
    %1587 = vmatprep.mubr.f32.mxu0 0.0
    %1588 = vmatmul.mubr.f32.gmra.mrb[0].mxu0 %v1509
    %v1589 = vpop.f32.mrb[0].mxu0
    %v1590 = vadd.f32 %v1503, %v1589
    %v1591 = vpop.f32.mrb[0].mxu0
    %v1592 = vadd.f32 %v1503, %v1591
    %1593 = vdwg.mxu0
    %s1594 = scalar_lea.vmem %s0, 240
    %v1595 = vld [vmem:[%s1594] sm:$0xff]
    %v1596 = vld [vmem:[%s1594 + $0x8] sm:$0x3]
    %s1597 = scalar_lea.vmem %s1, 240
    %v1598 = vld [vmem:[%s1597] sm:$0xff]
    %v1599 = vld [vmem:[%s1597 + $0x8] sm:$0x3]
    %1601 = vset.pattern.permute.xlu0 0
    %1602 = vperm.xlu0 %1601, %v1598
    %v1603 = vpop.permute.xlu0 %1602
    %1606 = vset.pattern.permute.xlu0 0
    %1607 = vperm.xlu0 %1606, %v1599
    %v1608 = vpop.permute.xlu0 %1607
    %v1611 = vsel %vm33, %v1595, 0
    %v1614 = vsel %vm33, %v1596, 0
    %v1617 = vsel %vm40, %v1590, 0
    %v1620 = vsel %vm40, %v1592, 0
    %1622 = vmatprep.subr.mxu0 %v1586
    %1623 = vmatpush1.msra.mxu0 %v1584
    %1624 = vmatprep.subr.mxu0 %v1620
    %1625 = vmatpush1.msra.mxu0 %v1617
    %1626 = vmatprep.subr.mxu0 0.0
    %1627 = vmatpush1.msra.mxu0 0.0
    %1628 = vmatprep.subr.mxu0 0.0
    %1629 = vmatpush1.msra.mxu0 0.0
    %1630 = vmatprep.subr.mxu0 0.0
    %1631 = vmatpush1.msra.mxu0 0.0
    %1632 = vmatprep.subr.mxu0 0.0
    %1633 = vmatpush1.msra.mxu0 0.0
    %1634 = vmatprep.subr.mxu0 0.0
    %1635 = vmatpush1.msra.mxu0 0.0
    %1636 = vmatprep.subr.mxu0 0.0
    %1637 = vmatpush1.msra.mxu0 0.0
    %1638 = vmatprep.subr.mxu0 0.0
    %1639 = vmatpush1.msra.mxu0 0.0
    %1640 = vmatprep.subr.mxu0 0.0
    %1641 = vmatpush1.msra.mxu0 0.0
    %1642 = vmatprep.subr.mxu0 0.0
    %1643 = vmatpush1.msra.mxu0 0.0
    %1644 = vmatprep.subr.mxu0 0.0
    %1645 = vmatpush1.msra.mxu0 0.0
    %1646 = vmatprep.subr.mxu0 0.0
    %1647 = vmatpush1.msra.mxu0 0.0
    %1648 = vmatprep.subr.mxu0 0.0
    %1649 = vmatpush1.msra.mxu0 0.0
    %1650 = vmatprep.subr.mxu0 0.0
    %1651 = vmatpush1.msra.mxu0 0.0
    %1652 = vmatprep.subr.mxu0 0.0
    %1653 = vmatpush1.msra.mxu0 0.0
    %1654 = vmatprep.subr.mxu0 0.0
    %1655 = vmatpush1.msra.mxu0 0.0
    %1656 = vmatprep.subr.mxu0 0.0
    %1657 = vmatpush1.msra.mxu0 0.0
    %1658 = vmatprep.subr.mxu0 0.0
    %1659 = vmatpush1.msra.mxu0 0.0
    %1660 = vmatprep.subr.mxu0 0.0
    %1661 = vmatpush1.msra.mxu0 0.0
    %1662 = vmatprep.subr.mxu0 0.0
    %1663 = vmatpush1.msra.mxu0 0.0
    %1664 = vmatprep.subr.mxu0 0.0
    %1665 = vmatpush1.msra.mxu0 0.0
    %1666 = vmatprep.subr.mxu0 0.0
    %1667 = vmatpush1.msra.mxu0 0.0
    %1668 = vmatprep.subr.mxu0 0.0
    %1669 = vmatpush1.msra.mxu0 0.0
    %1670 = vmatprep.subr.mxu0 0.0
    %1671 = vmatpush1.msra.mxu0 0.0
    %1672 = vmatprep.subr.mxu0 0.0
    %1673 = vmatpush1.msra.mxu0 0.0
    %1674 = vmatprep.subr.mxu0 0.0
    %1675 = vmatpush1.msra.mxu0 0.0
    %1676 = vmatprep.subr.mxu0 0.0
    %1677 = vmatpush1.msra.mxu0 0.0
    %1678 = vmatprep.subr.mxu0 0.0
    %1679 = vmatpush1.msra.mxu0 0.0
    %1680 = vmatprep.subr.mxu0 0.0
    %1681 = vmatpush1.msra.mxu0 0.0
    %1682 = vmatprep.subr.mxu0 0.0
    %1683 = vmatpush1.msra.mxu0 0.0
    %1684 = vmatprep.subr.mxu0 0.0
    %1685 = vmatpush1.msra.mxu0 0.0
    %1686 = vmatprep.mubr.f32.mxu0 0.0
    %1687 = vmatmul.mubr.f32.gmra.mrb[0].mxu0 %v1611
    %v1688 = vpop.f32.mrb[0].mxu0
    %v1689 = vadd.f32 %v1603, %v1688
    %v1690 = vpop.f32.mrb[0].mxu0
    %v1691 = vadd.f32 %v1603, %v1690
    %1692 = vmatprep.mubr.f32.mxu0 0.0
    %1693 = vmatmul.mubr.f32.gmra.mrb[0].mxu0 %v1614
    %v1694 = vpop.f32.mrb[0].mxu0
    %v1695 = vadd.f32 %v1608, %v1694
    %v1696 = vpop.f32.mrb[0].mxu0
    %v1697 = vadd.f32 %v1608, %v1696
    %1698 = vdwg.mxu0
    %s1699 = scalar_lea.vmem %s0, 256
    %v1700 = vld [vmem:[%s1699] sm:$0xff]
    %v1701 = vld [vmem:[%s1699 + $0x8] sm:$0x3]
    %s1702 = scalar_lea.vmem %s1, 256
    %v1703 = vld [vmem:[%s1702] sm:$0xff]
    %v1704 = vld [vmem:[%s1702 + $0x8] sm:$0x3]
    %1706 = vset.pattern.permute.xlu0 0
    %1707 = vperm.xlu0 %1706, %v1703
    %v1708 = vpop.permute.xlu0 %1707
    %1711 = vset.pattern.permute.xlu0 0
    %1712 = vperm.xlu0 %1711, %v1704
    %v1713 = vpop.permute.xlu0 %1712
    %v1716 = vsel %vm33, %v1700, 0
    %v1719 = vsel %vm33, %v1701, 0
    %v1722 = vsel %vm40, %v1695, 0
    %v1725 = vsel %vm40, %v1697, 0
    %1727 = vmatprep.subr.mxu0 %v1691
    %1728 = vmatpush1.msra.mxu0 %v1689
    %1729 = vmatprep.subr.mxu0 %v1725
    %1730 = vmatpush1.msra.mxu0 %v1722
    %1731 = vmatprep.subr.mxu0 0.0
    %1732 = vmatpush1.msra.mxu0 0.0
    %1733 = vmatprep.subr.mxu0 0.0
    %1734 = vmatpush1.msra.mxu0 0.0
    %1735 = vmatprep.subr.mxu0 0.0
    %1736 = vmatpush1.msra.mxu0 0.0
    %1737 = vmatprep.subr.mxu0 0.0
    %1738 = vmatpush1.msra.mxu0 0.0
    %1739 = vmatprep.subr.mxu0 0.0
    %1740 = vmatpush1.msra.mxu0 0.0
    %1741 = vmatprep.subr.mxu0 0.0
    %1742 = vmatpush1.msra.mxu0 0.0
    %1743 = vmatprep.subr.mxu0 0.0
    %1744 = vmatpush1.msra.mxu0 0.0
    %1745 = vmatprep.subr.mxu0 0.0
    %1746 = vmatpush1.msra.mxu0 0.0
    %1747 = vmatprep.subr.mxu0 0.0
    %1748 = vmatpush1.msra.mxu0 0.0
    %1749 = vmatprep.subr.mxu0 0.0
    %1750 = vmatpush1.msra.mxu0 0.0
    %1751 = vmatprep.subr.mxu0 0.0
    %1752 = vmatpush1.msra.mxu0 0.0
    %1753 = vmatprep.subr.mxu0 0.0
    %1754 = vmatpush1.msra.mxu0 0.0
    %1755 = vmatprep.subr.mxu0 0.0
    %1756 = vmatpush1.msra.mxu0 0.0
    %1757 = vmatprep.subr.mxu0 0.0
    %1758 = vmatpush1.msra.mxu0 0.0
    %1759 = vmatprep.subr.mxu0 0.0
    %1760 = vmatpush1.msra.mxu0 0.0
    %1761 = vmatprep.subr.mxu0 0.0
    %1762 = vmatpush1.msra.mxu0 0.0
    %1763 = vmatprep.subr.mxu0 0.0
    %1764 = vmatpush1.msra.mxu0 0.0
    %1765 = vmatprep.subr.mxu0 0.0
    %1766 = vmatpush1.msra.mxu0 0.0
    %1767 = vmatprep.subr.mxu0 0.0
    %1768 = vmatpush1.msra.mxu0 0.0
    %1769 = vmatprep.subr.mxu0 0.0
    %1770 = vmatpush1.msra.mxu0 0.0
    %1771 = vmatprep.subr.mxu0 0.0
    %1772 = vmatpush1.msra.mxu0 0.0
    %1773 = vmatprep.subr.mxu0 0.0
    %1774 = vmatpush1.msra.mxu0 0.0
    %1775 = vmatprep.subr.mxu0 0.0
    %1776 = vmatpush1.msra.mxu0 0.0
    %1777 = vmatprep.subr.mxu0 0.0
    %1778 = vmatpush1.msra.mxu0 0.0
    %1779 = vmatprep.subr.mxu0 0.0
    %1780 = vmatpush1.msra.mxu0 0.0
    %1781 = vmatprep.subr.mxu0 0.0
    %1782 = vmatpush1.msra.mxu0 0.0
    %1783 = vmatprep.subr.mxu0 0.0
    %1784 = vmatpush1.msra.mxu0 0.0
    %1785 = vmatprep.subr.mxu0 0.0
    %1786 = vmatpush1.msra.mxu0 0.0
    %1787 = vmatprep.subr.mxu0 0.0
    %1788 = vmatpush1.msra.mxu0 0.0
    %1789 = vmatprep.subr.mxu0 0.0
    %1790 = vmatpush1.msra.mxu0 0.0
    %1791 = vmatprep.mubr.f32.mxu0 0.0
    %1792 = vmatmul.mubr.f32.gmra.mrb[0].mxu0 %v1716
    %v1793 = vpop.f32.mrb[0].mxu0
    %v1794 = vadd.f32 %v1708, %v1793
    %v1795 = vpop.f32.mrb[0].mxu0
    %v1796 = vadd.f32 %v1708, %v1795
    %1797 = vmatprep.mubr.f32.mxu0 0.0
    %1798 = vmatmul.mubr.f32.gmra.mrb[0].mxu0 %v1719
    %v1799 = vpop.f32.mrb[0].mxu0
    %v1800 = vadd.f32 %v1713, %v1799
    %v1801 = vpop.f32.mrb[0].mxu0
    %v1802 = vadd.f32 %v1713, %v1801
    %1803 = vdwg.mxu0
    %s1804 = scalar_lea.vmem %s0, 272
    %v1805 = vld [vmem:[%s1804] sm:$0xff]
    %v1806 = vld [vmem:[%s1804 + $0x8] sm:$0x3]
    %s1807 = scalar_lea.vmem %s1, 272
    %v1808 = vld [vmem:[%s1807] sm:$0xff]
    %v1809 = vld [vmem:[%s1807 + $0x8] sm:$0x3]
    %1811 = vset.pattern.permute.xlu0 0
    %1812 = vperm.xlu0 %1811, %v1808
    %v1813 = vpop.permute.xlu0 %1812
    %1816 = vset.pattern.permute.xlu0 0
    %1817 = vperm.xlu0 %1816, %v1809
    %v1818 = vpop.permute.xlu0 %1817
    %v1821 = vsel %vm33, %v1805, 0
    %v1824 = vsel %vm33, %v1806, 0
    %v1827 = vsel %vm40, %v1800, 0
    %v1830 = vsel %vm40, %v1802, 0
    %1832 = vmatprep.subr.mxu0 %v1796
    %1833 = vmatpush1.msra.mxu0 %v1794
    %1834 = vmatprep.subr.mxu0 %v1830
    %1835 = vmatpush1.msra.mxu0 %v1827
    %1836 = vmatprep.subr.mxu0 0.0
    %1837 = vmatpush1.msra.mxu0 0.0
    %1838 = vmatprep.subr.mxu0 0.0
    %1839 = vmatpush1.msra.mxu0 0.0
    %1840 = vmatprep.subr.mxu0 0.0
    %1841 = vmatpush1.msra.mxu0 0.0
    %1842 = vmatprep.subr.mxu0 0.0
    %1843 = vmatpush1.msra.mxu0 0.0
    %1844 = vmatprep.subr.mxu0 0.0
    %1845 = vmatpush1.msra.mxu0 0.0
    %1846 = vmatprep.subr.mxu0 0.0
    %1847 = vmatpush1.msra.mxu0 0.0
    %1848 = vmatprep.subr.mxu0 0.0
    %1849 = vmatpush1.msra.mxu0 0.0
    %1850 = vmatprep.subr.mxu0 0.0
    %1851 = vmatpush1.msra.mxu0 0.0
    %1852 = vmatprep.subr.mxu0 0.0
    %1853 = vmatpush1.msra.mxu0 0.0
    %1854 = vmatprep.subr.mxu0 0.0
    %1855 = vmatpush1.msra.mxu0 0.0
    %1856 = vmatprep.subr.mxu0 0.0
    %1857 = vmatpush1.msra.mxu0 0.0
    %1858 = vmatprep.subr.mxu0 0.0
    %1859 = vmatpush1.msra.mxu0 0.0
    %1860 = vmatprep.subr.mxu0 0.0
    %1861 = vmatpush1.msra.mxu0 0.0
    %1862 = vmatprep.subr.mxu0 0.0
    %1863 = vmatpush1.msra.mxu0 0.0
    %1864 = vmatprep.subr.mxu0 0.0
    %1865 = vmatpush1.msra.mxu0 0.0
    %1866 = vmatprep.subr.mxu0 0.0
    %1867 = vmatpush1.msra.mxu0 0.0
    %1868 = vmatprep.subr.mxu0 0.0
    %1869 = vmatpush1.msra.mxu0 0.0
    %1870 = vmatprep.subr.mxu0 0.0
    %1871 = vmatpush1.msra.mxu0 0.0
    %1872 = vmatprep.subr.mxu0 0.0
    %1873 = vmatpush1.msra.mxu0 0.0
    %1874 = vmatprep.subr.mxu0 0.0
    %1875 = vmatpush1.msra.mxu0 0.0
    %1876 = vmatprep.subr.mxu0 0.0
    %1877 = vmatpush1.msra.mxu0 0.0
    %1878 = vmatprep.subr.mxu0 0.0
    %1879 = vmatpush1.msra.mxu0 0.0
    %1880 = vmatprep.subr.mxu0 0.0
    %1881 = vmatpush1.msra.mxu0 0.0
    %1882 = vmatprep.subr.mxu0 0.0
    %1883 = vmatpush1.msra.mxu0 0.0
    %1884 = vmatprep.subr.mxu0 0.0
    %1885 = vmatpush1.msra.mxu0 0.0
    %1886 = vmatprep.subr.mxu0 0.0
    %1887 = vmatpush1.msra.mxu0 0.0
    %1888 = vmatprep.subr.mxu0 0.0
    %1889 = vmatpush1.msra.mxu0 0.0
    %1890 = vmatprep.subr.mxu0 0.0
    %1891 = vmatpush1.msra.mxu0 0.0
    %1892 = vmatprep.subr.mxu0 0.0
    %1893 = vmatpush1.msra.mxu0 0.0
    %1894 = vmatprep.subr.mxu0 0.0
    %1895 = vmatpush1.msra.mxu0 0.0
    %1896 = vmatprep.mubr.f32.mxu0 0.0
    %1897 = vmatmul.mubr.f32.gmra.mrb[0].mxu0 %v1821
    %v1898 = vpop.f32.mrb[0].mxu0
    %v1899 = vadd.f32 %v1813, %v1898
    %v1900 = vpop.f32.mrb[0].mxu0
    %v1901 = vadd.f32 %v1813, %v1900
    %1902 = vmatprep.mubr.f32.mxu0 0.0
    %1903 = vmatmul.mubr.f32.gmra.mrb[0].mxu0 %v1824
    %v1904 = vpop.f32.mrb[0].mxu0
    %v1905 = vadd.f32 %v1818, %v1904
    %v1906 = vpop.f32.mrb[0].mxu0
    %v1907 = vadd.f32 %v1818, %v1906
    %1908 = vdwg.mxu0
    %s1909 = scalar_lea.vmem %s0, 288
    %v1910 = vld [vmem:[%s1909] sm:$0xff]
    %v1911 = vld [vmem:[%s1909 + $0x8] sm:$0x3]
    %s1912 = scalar_lea.vmem %s1, 288
    %v1913 = vld [vmem:[%s1912] sm:$0xff]
    %v1914 = vld [vmem:[%s1912 + $0x8] sm:$0x3]
    %1916 = vset.pattern.permute.xlu0 0
    %1917 = vperm.xlu0 %1916, %v1913
    %v1918 = vpop.permute.xlu0 %1917
    %1921 = vset.pattern.permute.xlu0 0
    %1922 = vperm.xlu0 %1921, %v1914
    %v1923 = vpop.permute.xlu0 %1922
    %v1926 = vsel %vm33, %v1910, 0
    %v1929 = vsel %vm33, %v1911, 0
    %v1932 = vsel %vm40, %v1905, 0
    %v1935 = vsel %vm40, %v1907, 0
    %1937 = vmatprep.subr.mxu0 %v1901
    %1938 = vmatpush1.msra.mxu0 %v1899
    %1939 = vmatprep.subr.mxu0 %v1935
    %1940 = vmatpush1.msra.mxu0 %v1932
    %1941 = vmatprep.subr.mxu0 0.0
    %1942 = vmatpush1.msra.mxu0 0.0
    %1943 = vmatprep.subr.mxu0 0.0
    %1944 = vmatpush1.msra.mxu0 0.0
    %1945 = vmatprep.subr.mxu0 0.0
    %1946 = vmatpush1.msra.mxu0 0.0
    %1947 = vmatprep.subr.mxu0 0.0
    %1948 = vmatpush1.msra.mxu0 0.0
    %1949 = vmatprep.subr.mxu0 0.0
    %1950 = vmatpush1.msra.mxu0 0.0
    %1951 = vmatprep.subr.mxu0 0.0
    %1952 = vmatpush1.msra.mxu0 0.0
    %1953 = vmatprep.subr.mxu0 0.0
    %1954 = vmatpush1.msra.mxu0 0.0
    %1955 = vmatprep.subr.mxu0 0.0
    %1956 = vmatpush1.msra.mxu0 0.0
    %1957 = vmatprep.subr.mxu0 0.0
    %1958 = vmatpush1.msra.mxu0 0.0
    %1959 = vmatprep.subr.mxu0 0.0
    %1960 = vmatpush1.msra.mxu0 0.0
    %1961 = vmatprep.subr.mxu0 0.0
    %1962 = vmatpush1.msra.mxu0 0.0
    %1963 = vmatprep.subr.mxu0 0.0
    %1964 = vmatpush1.msra.mxu0 0.0
    %1965 = vmatprep.subr.mxu0 0.0
    %1966 = vmatpush1.msra.mxu0 0.0
    %1967 = vmatprep.subr.mxu0 0.0
    %1968 = vmatpush1.msra.mxu0 0.0
    %1969 = vmatprep.subr.mxu0 0.0
    %1970 = vmatpush1.msra.mxu0 0.0
    %1971 = vmatprep.subr.mxu0 0.0
    %1972 = vmatpush1.msra.mxu0 0.0
    %1973 = vmatprep.subr.mxu0 0.0
    %1974 = vmatpush1.msra.mxu0 0.0
    %1975 = vmatprep.subr.mxu0 0.0
    %1976 = vmatpush1.msra.mxu0 0.0
    %1977 = vmatprep.subr.mxu0 0.0
    %1978 = vmatpush1.msra.mxu0 0.0
    %1979 = vmatprep.subr.mxu0 0.0
    %1980 = vmatpush1.msra.mxu0 0.0
    %1981 = vmatprep.subr.mxu0 0.0
    %1982 = vmatpush1.msra.mxu0 0.0
    %1983 = vmatprep.subr.mxu0 0.0
    %1984 = vmatpush1.msra.mxu0 0.0
    %1985 = vmatprep.subr.mxu0 0.0
    %1986 = vmatpush1.msra.mxu0 0.0
    %1987 = vmatprep.subr.mxu0 0.0
    %1988 = vmatpush1.msra.mxu0 0.0
    %1989 = vmatprep.subr.mxu0 0.0
    %1990 = vmatpush1.msra.mxu0 0.0
    %1991 = vmatprep.subr.mxu0 0.0
    %1992 = vmatpush1.msra.mxu0 0.0
    %1993 = vmatprep.subr.mxu0 0.0
    %1994 = vmatpush1.msra.mxu0 0.0
    %1995 = vmatprep.subr.mxu0 0.0
    %1996 = vmatpush1.msra.mxu0 0.0
    %1997 = vmatprep.subr.mxu0 0.0
    %1998 = vmatpush1.msra.mxu0 0.0
    %1999 = vmatprep.subr.mxu0 0.0
    %2000 = vmatpush1.msra.mxu0 0.0
    %2001 = vmatprep.mubr.f32.mxu0 0.0
    %2002 = vmatmul.mubr.f32.gmra.mrb[0].mxu0 %v1926
    %v2003 = vpop.f32.mrb[0].mxu0
    %v2004 = vadd.f32 %v1918, %v2003
    %v2005 = vpop.f32.mrb[0].mxu0
    %v2006 = vadd.f32 %v1918, %v2005
    %2007 = vmatprep.mubr.f32.mxu0 0.0
    %2008 = vmatmul.mubr.f32.gmra.mrb[0].mxu0 %v1929
    %v2009 = vpop.f32.mrb[0].mxu0
    %v2010 = vadd.f32 %v1923, %v2009
    %v2011 = vpop.f32.mrb[0].mxu0
    %v2012 = vadd.f32 %v1923, %v2011
    %2013 = vdwg.mxu0
    %s2014 = scalar_lea.vmem %s0, 304
    %v2015 = vld [vmem:[%s2014] sm:$0xff]
    %v2016 = vld [vmem:[%s2014 + $0x8] sm:$0x3]
    %s2017 = scalar_lea.vmem %s1, 304
    %v2018 = vld [vmem:[%s2017] sm:$0xff]
    %v2019 = vld [vmem:[%s2017 + $0x8] sm:$0x3]
    %2021 = vset.pattern.permute.xlu0 0
    %2022 = vperm.xlu0 %2021, %v2018
    %v2023 = vpop.permute.xlu0 %2022
    %2026 = vset.pattern.permute.xlu0 0
    %2027 = vperm.xlu0 %2026, %v2019
    %v2028 = vpop.permute.xlu0 %2027
    %v2031 = vsel %vm33, %v2015, 0
    %v2034 = vsel %vm33, %v2016, 0
    %v2037 = vsel %vm40, %v2010, 0
    %v2040 = vsel %vm40, %v2012, 0
    %2042 = vmatprep.subr.mxu0 %v2006
    %2043 = vmatpush1.msra.mxu0 %v2004
    %2044 = vmatprep.subr.mxu0 %v2040
    %2045 = vmatpush1.msra.mxu0 %v2037
    %2046 = vmatprep.subr.mxu0 0.0
    %2047 = vmatpush1.msra.mxu0 0.0
    %2048 = vmatprep.subr.mxu0 0.0
    %2049 = vmatpush1.msra.mxu0 0.0
    %2050 = vmatprep.subr.mxu0 0.0
    %2051 = vmatpush1.msra.mxu0 0.0
    %2052 = vmatprep.subr.mxu0 0.0
    %2053 = vmatpush1.msra.mxu0 0.0
    %2054 = vmatprep.subr.mxu0 0.0
    %2055 = vmatpush1.msra.mxu0 0.0
    %2056 = vmatprep.subr.mxu0 0.0
    %2057 = vmatpush1.msra.mxu0 0.0
    %2058 = vmatprep.subr.mxu0 0.0
    %2059 = vmatpush1.msra.mxu0 0.0
    %2060 = vmatprep.subr.mxu0 0.0
    %2061 = vmatpush1.msra.mxu0 0.0
    %2062 = vmatprep.subr.mxu0 0.0
    %2063 = vmatpush1.msra.mxu0 0.0
    %2064 = vmatprep.subr.mxu0 0.0
    %2065 = vmatpush1.msra.mxu0 0.0
    %2066 = vmatprep.subr.mxu0 0.0
    %2067 = vmatpush1.msra.mxu0 0.0
    %2068 = vmatprep.subr.mxu0 0.0
    %2069 = vmatpush1.msra.mxu0 0.0
    %2070 = vmatprep.subr.mxu0 0.0
    %2071 = vmatpush1.msra.mxu0 0.0
    %2072 = vmatprep.subr.mxu0 0.0
    %2073 = vmatpush1.msra.mxu0 0.0
    %2074 = vmatprep.subr.mxu0 0.0
    %2075 = vmatpush1.msra.mxu0 0.0
    %2076 = vmatprep.subr.mxu0 0.0
    %2077 = vmatpush1.msra.mxu0 0.0
    %2078 = vmatprep.subr.mxu0 0.0
    %2079 = vmatpush1.msra.mxu0 0.0
    %2080 = vmatprep.subr.mxu0 0.0
    %2081 = vmatpush1.msra.mxu0 0.0
    %2082 = vmatprep.subr.mxu0 0.0
    %2083 = vmatpush1.msra.mxu0 0.0
    %2084 = vmatprep.subr.mxu0 0.0
    %2085 = vmatpush1.msra.mxu0 0.0
    %2086 = vmatprep.subr.mxu0 0.0
    %2087 = vmatpush1.msra.mxu0 0.0
    %2088 = vmatprep.subr.mxu0 0.0
    %2089 = vmatpush1.msra.mxu0 0.0
    %2090 = vmatprep.subr.mxu0 0.0
    %2091 = vmatpush1.msra.mxu0 0.0
    %2092 = vmatprep.subr.mxu0 0.0
    %2093 = vmatpush1.msra.mxu0 0.0
    %2094 = vmatprep.subr.mxu0 0.0
    %2095 = vmatpush1.msra.mxu0 0.0
    %2096 = vmatprep.subr.mxu0 0.0
    %2097 = vmatpush1.msra.mxu0 0.0
    %2098 = vmatprep.subr.mxu0 0.0
    %2099 = vmatpush1.msra.mxu0 0.0
    %2100 = vmatprep.subr.mxu0 0.0
    %2101 = vmatpush1.msra.mxu0 0.0
    %2102 = vmatprep.subr.mxu0 0.0
    %2103 = vmatpush1.msra.mxu0 0.0
    %2104 = vmatprep.subr.mxu0 0.0
    %2105 = vmatpush1.msra.mxu0 0.0
    %2106 = vmatprep.mubr.f32.mxu0 0.0
    %2107 = vmatmul.mubr.f32.gmra.mrb[0].mxu0 %v2031
    %v2108 = vpop.f32.mrb[0].mxu0
    %v2109 = vadd.f32 %v2023, %v2108
    %v2110 = vpop.f32.mrb[0].mxu0
    %v2111 = vadd.f32 %v2023, %v2110
    %2112 = vmatprep.mubr.f32.mxu0 0.0
    %2113 = vmatmul.mubr.f32.gmra.mrb[0].mxu0 %v2034
    %v2114 = vpop.f32.mrb[0].mxu0
    %v2115 = vadd.f32 %v2028, %v2114
    %v2116 = vpop.f32.mrb[0].mxu0
    %v2117 = vadd.f32 %v2028, %v2116
    %2118 = vdwg.mxu0
    %2119 = vst [vmem:[#allocation2] sm:$0xff] %v2109
    %2120 = vst [vmem:[#allocation2 + $0x8] sm:$0xff] %v2111
    %2121 = vst [vmem:[#allocation2 + $0x10] sm:$0x3] %v2115
    %2122 = vst [vmem:[#allocation2 + $0x18] sm:$0x3] %v2117
    // Predicated region
    $region14: #{tpu_custom_call.1} parent=1 // pred_check
      _
    $region15: #{tpu_custom_call.1} parent=1 // pred_check_branch
      %2124 = sbr.rel (0) target = $region17
    $region16: #{tpu_custom_call.1} parent=1 // pred_region
      %s2126 = ssub.s32 512, 512
      %2127 = vsyncadd [#allocation3], %s2126
      %s2128 = sshll.u32 [#allocation2], 4
      %s2129 = int_to_ptr.vmem [resolvable:$true] %s2128
      %2134 = dma.vmem_to_hbm [thread:$0]  %s2129, 512, %s3, [#allocation3], 256, 256, 16
    $region17: #{tpu_custom_call.1} parent=1 // pred_fallthru
      _
    // Predicated region
    $region18: #{tpu_custom_call.1} parent=1 // pred_check
      _
    $region19: #{tpu_custom_call.1} parent=1 // pred_check_branch
      %2136 = sbr.rel (0) target = $region21
    $region20: #{tpu_custom_call.1} parent=1 // pred_region
      %2137 = dma.done [#allocation3], 512
    $region21: #{tpu_custom_call.1} parent=1 // pred_fallthru
      _
    %2138 = vsyncpa [#allocation3], 1

</llo_original>
